<compile_context>
chip_gen: v5e
topology: v5e:2x2
jax: 0.10.0
libtpu: 0.0.40
codegen_flags: <defaults>
</compile_context>

<pallas_src>
import math

import jax
import jax.numpy as jnp
from jax.experimental import pallas as pl
from jax.experimental.pallas import tpu as pltpu

# ---- model dims (from define_cnn_layers) + small example dims -------------
B = 2            # batch
S = 16           # sequence length (tokens)
G = 4            # generated_columns_count
VOCAB = 100      # stand-in vocab for the BERT embedding
CLASSES = 768
RES_CH = 48
DIL_CH = 48
SKIP_CH = 128
OUT_LEN = 256
K = 3            # kernel_size
LOUT = S - (K - 1)   # valid-conv output length (no padding)
BN_EPS = 1e-5


# ---------------------------------------------------------------------------
# Pallas kernel: CNN head + pooling + MLP head for a tile of BB batch elements.
# ---------------------------------------------------------------------------
def bmodel_kernel(h_ref, gproj_ref, w_start_ref, w_fg_ref, w_skip_ref,
                  w_end_ref, b_end_ref, w1x_ref, w2_ref, b2_ref, out_ref):
    bb = h_ref.shape[0]
    m = bb * S

    # nn.ReLU ; Dropout = identity (eval).  h arrives in bf16 (halved HBM bytes).
    h = jnp.maximum(h_ref[...], 0.0).reshape(m, CLASSES)

    # start_conv (1x1 conv) == native bf16 MXU matmul -> (m, RES_CH) in f32.
    x = jnp.dot(h, w_start_ref[...], preferred_element_type=jnp.float32)

    # filter_convs[0] + gate_convs[0] (k=3, valid) fused into ONE im2col matmul.
    #   X3 row j = [x[j], x[j+1], x[j+2]]   (sublane rolls on the XLU slot)
    # Rows wrapping past each batch element's valid range are masked before the pool.
    x1 = pltpu.roll(x, shift=m - 1, axis=0)      # row j -> x[j+1]
    x2 = pltpu.roll(x, shift=m - 2, axis=0)      # row j -> x[j+2]
    x3 = jnp.concatenate([x, x1, x2], axis=1)                        # (m, K*RES_CH)
    conv = jnp.dot(x3, w_fg_ref[...].astype(jnp.float32),
                   preferred_element_type=jnp.float32)               # (m, 2*DIL_CH)
    filt = jnp.tanh(conv[:, :DIL_CH])                                # filter + tanh
    gate = jax.nn.sigmoid(conv[:, DIL_CH:2 * DIL_CH])                # gate + sigmoid
    xg = filt * gate                                                 # (m, DIL_CH)
    # residual_convs[0] path is dead for blocks=layers=1 -> removed entirely.

    # skip_convs[0] (1x1), relu, end_conv_1 (1x1) + bias, relu.
    skip = jnp.dot(xg, w_skip_ref[...].astype(jnp.float32),
                   preferred_element_type=jnp.float32)               # (m, SKIP_CH)
    z = jnp.maximum(skip, 0.0)
    z = jnp.dot(z, w_end_ref[...].astype(jnp.float32),
                preferred_element_type=jnp.float32) + b_end_ref[...]
    z = jnp.maximum(z, 0.0)                                          # (m, CLASSES)
    # BatchNorm1d (eval) is folded past the max-pool into w1x / gproj (scale > 0).

    # AdaptiveMaxPool1d(1): per batch element, max over the LOUT valid conv rows.
    valid = jax.lax.broadcasted_iota(jnp.int32, (S, CLASSES), 0) < LOUT
    pooled_rows = []
    for b in range(bb):                                              # static unroll
        zb = jnp.where(valid, z[b * S:(b + 1) * S, :], -jnp.inf)
        pooled_rows.append(jnp.max(zb, axis=0, keepdims=True))
    pooled = (pooled_rows[0] if bb == 1
              else jnp.concatenate(pooled_rows, axis=0))             # (bb, CLASSES)

    # top1 on cat([BN(pool), gants], 1): BN scale folded into w1x, and the
    # gants @ w1g + b1 (+ BN-shift) term arrives precomputed as gproj.
    t = (jnp.dot(pooled, w1x_ref[...].astype(jnp.float32),
                 preferred_element_type=jnp.float32)
         + gproj_ref[...].reshape(bb, OUT_LEN))                      # (bb, OUT_LEN)
    t = jnp.where(t >= 0.0, t, 1e-05 * t)                            # leaky_relu(1e-5)
    y = jnp.dot(t, w2_ref[...], preferred_element_type=jnp.float32) + b2_ref[...]
    out_ref[...] = jax.nn.sigmoid(y).reshape(bb, 1, 1)


# ---------------------------------------------------------------------------
# Wrapper / parameter setup (plain-JAX glue).
# ---------------------------------------------------------------------------
def _tensorcores_per_device() -> int:
    """v7x exposes 2 TensorCores per Pallas device; v5e/v6e expose 1."""
    try:
        dev = jax.devices()[0]
        if dev.platform != "tpu":
            return 1
        kind = dev.device_kind.lower()
        if "v7" in kind or "tpu7" in kind:
            return 2
    except Exception:
        pass
    return 1


def _full_spec(shape):
    """Full-array (untiled) block spec for a weight."""
    n = len(shape)
    return pl.BlockSpec(shape, lambda b, n=n: (0,) * n)


def init_params(key):
    ks = jax.random.split(key, 11)

    def u(k, shape, fan_in):
        bound = 1.0 / math.sqrt(fan_in)
        return jax.random.uniform(k, shape, jnp.float32, -bound, bound)

    p = {}
    p["w_start"] = u(ks[0], (CLASSES, RES_CH), CLASSES)          # Conv1d(768->48, k=1), no bias
    p["wf"] = u(ks[1], (K, RES_CH, DIL_CH), RES_CH * K)          # filter_convs[0], k=3
    p["wg"] = u(ks[2], (K, RES_CH, DIL_CH), RES_CH * K)          # gate_convs[0],   k=3
    p["w_skip"] = u(ks[3], (DIL_CH, SKIP_CH), DIL_CH)            # skip_convs[0],   k=1
    # residual_convs[0] output is overwritten before use (blocks=layers=1): dead path, dropped.
    p["w_end"] = u(ks[4], (SKIP_CH, CLASSES), SKIP_CH)           # end_conv_1, k=1 (+bias)
    p["b_end"] = u(ks[5], (1, CLASSES), SKIP_CH)
    # BatchNorm1d(768) eval mode with fresh PyTorch defaults.
    p["bn_gamma"] = jnp.ones((CLASSES,), jnp.float32)
    p["bn_beta"] = jnp.zeros((CLASSES,), jnp.float32)
    p["bn_mean"] = jnp.zeros((CLASSES,), jnp.float32)
    p["bn_var"] = jnp.ones((CLASSES,), jnp.float32)
    fan1 = CLASSES + G
    p["w1x"] = u(ks[6], (CLASSES, OUT_LEN), fan1)                # top1 (first 768 cols of cat)
    p["w1g"] = u(ks[7], (G, OUT_LEN), fan1)                      # top1 (gants cols of cat)
    p["b1"] = u(ks[8], (1, OUT_LEN), fan1)
    p["w2"] = u(ks[9], (OUT_LEN, 1), OUT_LEN)                    # top2
    p["b2"] = u(ks[10], (1, 1), OUT_LEN)
    return p


def _prep_kernel_weights(p):
    """Fold BN, fuse the filter/gate conv weights, cast big operands to bf16."""
    bn_scale = p["bn_gamma"] / jnp.sqrt(p["bn_var"] + BN_EPS)        # (768,), strictly > 0
    bn_shift = p["bn_beta"] - p["bn_mean"] * bn_scale                # (768,)
    # max_l(z*s + t) = s*max_l(z) + t  (s > 0): fold s into w1x, t @ w1x into b1.
    w1x_eff = p["w1x"] * bn_scale[:, None]
    b1_eff = p["b1"] + bn_shift @ p["w1x"]
    # Fuse the two k=3 convs along C_out and flatten (K, Cin, Cout) -> (K*Cin, 2*Cout)
    # to match the im2col layout used in the kernel.
    w_fg = jnp.concatenate([p["wf"].reshape(K * RES_CH, DIL_CH),
                            p["wg"].reshape(K * RES_CH, DIL_CH)], axis=1)
    weights = [
        p["w_start"].astype(jnp.bfloat16),
        w_fg.astype(jnp.bfloat16),
        p["w_skip"].astype(jnp.bfloat16),
        p["w_end"].astype(jnp.bfloat16),
        p["b_end"].astype(jnp.float32),
        w1x_eff.astype(jnp.bfloat16),
        p["w2"].astype(jnp.float32),
        p["b2"].astype(jnp.float32),
    ]
    return weights, b1_eff


def bmodel_forward(ids, masks, gants, emb_table, params, batch_block=None):
    # TODO(synk): pretrained DistilBERT encoder not reproducible here; stand-in
    # is a deterministic embedding lookup gated by the attention mask.
    h = emb_table[ids] * masks[..., None].astype(jnp.float32)       # (B, S, 768)
    h = h.astype(jnp.bfloat16)                                      # halve activation DMA

    weights, b1_eff = _prep_kernel_weights(params)
    # gants @ w1g + b1 (+ folded BN shift) is tiny and independent of the CNN head:
    # compute it in the prep graph instead of a heavily padded in-kernel MXU matmul.
    gproj = (gants @ params["w1g"] + b1_eff).astype(jnp.float32)    # (B, OUT_LEN)
    gproj = gproj[:, None, :]                                       # (B, 1, OUT_LEN)

    if batch_block is None:
        # 1 TensorCore (v5e/v6e): one grid step for the whole batch.
        # 2 TensorCores (v7x): keep grid=(B,) and let "parallel" shard across cores.
        batch_block = B if _tensorcores_per_device() <= 1 else max(1, B // 2)
    assert B % batch_block == 0
    grid = (B // batch_block,)

    in_specs = ([pl.BlockSpec((batch_block, S, CLASSES), lambda b: (b, 0, 0)),
                 pl.BlockSpec((batch_block, 1, OUT_LEN), lambda b: (b, 0, 0))]
                + [_full_spec(w.shape) for w in weights])

    out = pl.pallas_call(
        bmodel_kernel,
        out_shape=jax.ShapeDtypeStruct((B, 1, 1), jnp.float32),
        grid_spec=pltpu.PrefetchScalarGridSpec(
            num_scalar_prefetch=0,
            grid=grid,
            in_specs=in_specs,
            out_specs=pl.BlockSpec((batch_block, 1, 1), lambda b: (b, 0, 0)),
        ),
        compiler_params=pltpu.CompilerParams(dimension_semantics=("parallel",)),
    )(h, gproj, *weights)
    return out[:, 0, :]                                             # (B, 1) == torch.sigmoid(top2(...))


# ---------------------------------------------------------------------------
# Pure-JAX f32 reference implementing the ORIGINAL module structure
# (separate convs, BN before the pool, cat with gants) for correctness check.
# ---------------------------------------------------------------------------
def bmodel_reference(ids, masks, gants, emb_table, p):
    h = emb_table[ids] * masks[..., None].astype(jnp.float32)
    h = jnp.maximum(h, 0.0)
    x = jnp.einsum("bsc,cd->bsd", h, p["w_start"])                  # start_conv (1x1)
    lout = S - (K - 1)

    def conv3(w):                                                   # k=3 valid conv
        return (x[:, 0:lout, :] @ w[0] + x[:, 1:lout + 1, :] @ w[1]
                + x[:, 2:lout + 2, :] @ w[2])

    xg = jnp.tanh(conv3(p["wf"])) * jax.nn.sigmoid(conv3(p["wg"]))
    skip = xg @ p["w_skip"]
    z = jnp.maximum(jnp.maximum(skip, 0.0) @ p["w_end"] + p["b_end"], 0.0)
    scale = p["bn_gamma"] / jnp.sqrt(p["bn_var"] + BN_EPS)          # BatchNorm1d, eval
    shift = p["bn_beta"] - p["bn_mean"] * scale
    z = z * scale + shift
    pooled = jnp.max(z, axis=1)                                     # AdaptiveMaxPool1d(1)
    t = pooled @ p["w1x"] + gants @ p["w1g"] + p["b1"]
    t = jnp.where(t >= 0.0, t, 1e-05 * t)                           # leaky_relu(1e-5)
    return jax.nn.sigmoid(t @ p["w2"] + p["b2"])


if __name__ == "__main__":
    key = jax.random.PRNGKey(0)
    k_ids, k_g, k_emb, k_p = jax.random.split(key, 4)

    ids = jax.random.randint(k_ids, (B, S), 0, VOCAB)
    masks = jnp.ones((B, S), jnp.int32)
    gants = jax.random.normal(k_g, (B, G), jnp.float32)
    emb_table = jax.random.normal(k_emb, (VOCAB, CLASSES), jnp.float32)
    params = init_params(k_p)

    out = bmodel_forward(ids, masks, gants, emb_table, params)
    out = jax.block_until_ready(out)
    assert out.shape == (B, 1), out.shape

    ref = bmodel_reference(ids, masks, gants, emb_table, params)
    # Tolerance covers the bf16 weight/activation storage; structural errors are
    # orders of magnitude larger than this.
    assert jnp.allclose(out, ref, atol=5e-3, rtol=5e-3), (out, ref)

    print("KERNEL_OK")
</pallas_src>

<mosaic_0001>
module attributes {stable_mosaic.version = 11 : i64} {
  func.func @bmodel_kernel(%arg0: i32, %arg1: memref<2x16x768xbf16, #tpu.memory_space<vmem>>, %arg2: memref<2x1x256xf32, #tpu.memory_space<vmem>>, %arg3: memref<768x48xbf16, #tpu.memory_space<vmem>>, %arg4: memref<144x96xbf16, #tpu.memory_space<vmem>>, %arg5: memref<48x128xbf16, #tpu.memory_space<vmem>>, %arg6: memref<128x768xbf16, #tpu.memory_space<vmem>>, %arg7: memref<1x768xf32, #tpu.memory_space<vmem>>, %arg8: memref<768x256xbf16, #tpu.memory_space<vmem>>, %arg9: memref<256x1xf32, #tpu.memory_space<vmem>>, %arg10: memref<1x1xf32, #tpu.memory_space<vmem>>, %arg11: memref<2x1x1xf32, #tpu.memory_space<vmem>>) attributes {dimension_semantics = [#tpu.dimension_semantics<parallel>], iteration_bounds = array<i64: 1>, scalar_prefetch = 0 : i64, scratch_operands = 0 : i64, tpu.core_type = #tpu.core_type<tc>, window_params = [{transform_indices = @transform_0, window_bounds = array<i64: 2, 16, 768>}, {transform_indices = @transform_1, window_bounds = array<i64: 2, 1, 256>}, {pipeline_mode = #tpu.pipeline_mode<synchronous>, transform_indices = @transform_2, window_bounds = array<i64: 768, 48>}, {pipeline_mode = #tpu.pipeline_mode<synchronous>, transform_indices = @transform_3, window_bounds = array<i64: 144, 96>}, {pipeline_mode = #tpu.pipeline_mode<synchronous>, transform_indices = @transform_4, window_bounds = array<i64: 48, 128>}, {pipeline_mode = #tpu.pipeline_mode<synchronous>, transform_indices = @transform_5, window_bounds = array<i64: 128, 768>}, {pipeline_mode = #tpu.pipeline_mode<synchronous>, transform_indices = @transform_6, window_bounds = array<i64: 1, 768>}, {pipeline_mode = #tpu.pipeline_mode<synchronous>, transform_indices = @transform_7, window_bounds = array<i64: 768, 256>}, {pipeline_mode = #tpu.pipeline_mode<synchronous>, transform_indices = @transform_8, window_bounds = array<i64: 256, 1>}, {pipeline_mode = #tpu.pipeline_mode<synchronous>, transform_indices = @transform_9, window_bounds = array<i64: 1, 1>}, {transform_indices = @transform_10, window_bounds = array<i64: 2, 1, 1>}]} {
    %c0 = arith.constant 0 : index
    %c0_0 = arith.constant 0 : index
    %c0_1 = arith.constant 0 : index
    %0 = vector.load %arg1[%c0, %c0_0, %c0_1] : memref<2x16x768xbf16, #tpu.memory_space<vmem>>, vector<2x16x768xbf16>
    %cst = arith.constant 0.000000e+00 : bf16
    %1 = vector.broadcast %cst : bf16 to vector<2x16x768xbf16>
    %2 = arith.maximumf %0, %1 : vector<2x16x768xbf16>
    %3 = vector.shape_cast %2 : vector<2x16x768xbf16> to vector<32x768xbf16>
    %c0_2 = arith.constant 0 : index
    %c0_3 = arith.constant 0 : index
    %4 = vector.load %arg3[%c0_2, %c0_3] : memref<768x48xbf16, #tpu.memory_space<vmem>>, vector<768x48xbf16>
    %cst_4 = arith.constant dense<0.000000e+00> : vector<32x48xf32>
    %5 = tpu.matmul %3, %4, %cst_4 {dimension_numbers = #tpu.dot_dimension_numbers<[1], [0], [0], [1], [0, 0, 1, 1], [], []>} : vector<32x768xbf16>, vector<768x48xbf16>, vector<32x48xf32> -> vector<32x48xf32>
    %c31_i32 = arith.constant 31 : i32
    %6 = tpu.dynamic_rotate %5 by %c31_i32 dim 0 : vector<32x48xf32>, i32 -> vector<32x48xf32>
    %c30_i32 = arith.constant 30 : i32
    %7 = tpu.dynamic_rotate %5 by %c30_i32 dim 0 : vector<32x48xf32>, i32 -> vector<32x48xf32>
    %8 = tpu.concatenate %5, %6, %7 in 1 : vector<32x48xf32>, vector<32x48xf32>, vector<32x48xf32> -> vector<32x144xf32>
    %c0_5 = arith.constant 0 : index
    %c0_6 = arith.constant 0 : index
    %9 = vector.load %arg4[%c0_5, %c0_6] : memref<144x96xbf16, #tpu.memory_space<vmem>>, vector<144x96xbf16>
    %10 = arith.extf %9 : vector<144x96xbf16> to vector<144x96xf32>
    %cst_7 = arith.constant dense<0.000000e+00> : vector<32x96xf32>
    %11 = tpu.matmul %8, %10, %cst_7 {dimension_numbers = #tpu.dot_dimension_numbers<[1], [0], [0], [1], [0, 0, 1, 1], [], []>} : vector<32x144xf32>, vector<144x96xf32>, vector<32x96xf32> -> vector<32x96xf32>
    %12 = vector.extract_strided_slice %11 {offsets = [0, 0], sizes = [32, 48], strides = [1, 1]} : vector<32x96xf32> to vector<32x48xf32>
    %13 = math.tanh %12 : vector<32x48xf32>
    %14 = vector.extract_strided_slice %11 {offsets = [0, 48], sizes = [32, 48], strides = [1, 1]} : vector<32x96xf32> to vector<32x48xf32>
    %15 = arith.negf %14 : vector<32x48xf32>
    %16 = math.exp %15 : vector<32x48xf32>
    %cst_8 = arith.constant 1.000000e+00 : f32
    %17 = vector.broadcast %cst_8 : f32 to vector<32x48xf32>
    %18 = arith.addf %17, %16 : vector<32x48xf32>
    %19 = arith.divf %17, %18 : vector<32x48xf32>
    %20 = arith.mulf %13, %19 : vector<32x48xf32>
    %c0_9 = arith.constant 0 : index
    %c0_10 = arith.constant 0 : index
    %21 = vector.load %arg5[%c0_9, %c0_10] : memref<48x128xbf16, #tpu.memory_space<vmem>>, vector<48x128xbf16>
    %22 = arith.extf %21 : vector<48x128xbf16> to vector<48x128xf32>
    %cst_11 = arith.constant dense<0.000000e+00> : vector<32x128xf32>
    %23 = tpu.matmul %20, %22, %cst_11 {dimension_numbers = #tpu.dot_dimension_numbers<[1], [0], [0], [1], [0, 0, 1, 1], [], []>} : vector<32x48xf32>, vector<48x128xf32>, vector<32x128xf32> -> vector<32x128xf32>
    %cst_12 = arith.constant 0.000000e+00 : f32
    %24 = vector.broadcast %cst_12 : f32 to vector<32x128xf32>
    %25 = arith.maximumf %23, %24 : vector<32x128xf32>
    %c0_13 = arith.constant 0 : index
    %c0_14 = arith.constant 0 : index
    %26 = vector.load %arg6[%c0_13, %c0_14] : memref<128x768xbf16, #tpu.memory_space<vmem>>, vector<128x768xbf16>
    %27 = arith.extf %26 : vector<128x768xbf16> to vector<128x768xf32>
    %cst_15 = arith.constant dense<0.000000e+00> : vector<32x768xf32>
    %28 = tpu.matmul %25, %27, %cst_15 {dimension_numbers = #tpu.dot_dimension_numbers<[1], [0], [0], [1], [0, 0, 1, 1], [], []>} : vector<32x128xf32>, vector<128x768xf32>, vector<32x768xf32> -> vector<32x768xf32>
    %c0_16 = arith.constant 0 : index
    %c0_17 = arith.constant 0 : index
    %29 = vector.load %arg7[%c0_16, %c0_17] : memref<1x768xf32, #tpu.memory_space<vmem>>, vector<1x768xf32>
    %30 = vector.broadcast %29 : vector<1x768xf32> to vector<32x768xf32>
    %31 = arith.addf %28, %30 : vector<32x768xf32>
    %cst_18 = arith.constant 0.000000e+00 : f32
    %32 = vector.broadcast %cst_18 : f32 to vector<32x768xf32>
    %33 = arith.maximumf %31, %32 : vector<32x768xf32>
    %34 = tpu.iota {dimensions = array<i32: 0>} : vector<16x768xi32>
    %c14_i32 = arith.constant 14 : i32
    %35 = vector.broadcast %c14_i32 : i32 to vector<16x768xi32>
    %36 = arith.cmpi slt, %34, %35 : vector<16x768xi32>
    %37 = vector.extract_strided_slice %33 {offsets = [0, 0], sizes = [16, 768], strides = [1, 1]} : vector<32x768xf32> to vector<16x768xf32>
    %cst_19 = arith.constant 0xFF800000 : f32
    %38 = vector.broadcast %cst_19 : f32 to vector<16x768xf32>
    %39 = arith.select %36, %37, %38 : vector<16x768xi1>, vector<16x768xf32>
    %cst_20 = arith.constant dense<0xFF800000> : vector<768xf32>
    %40 = vector.multi_reduction <maximumf>, %39, %cst_20 [0] : vector<16x768xf32> to vector<768xf32>
    %41 = vector.shape_cast %40 : vector<768xf32> to vector<1x768xf32>
    %42 = vector.extract_strided_slice %33 {offsets = [16, 0], sizes = [16, 768], strides = [1, 1]} : vector<32x768xf32> to vector<16x768xf32>
    %cst_21 = arith.constant 0xFF800000 : f32
    %43 = vector.broadcast %cst_21 : f32 to vector<16x768xf32>
    %44 = arith.select %36, %42, %43 : vector<16x768xi1>, vector<16x768xf32>
    %cst_22 = arith.constant dense<0xFF800000> : vector<768xf32>
    %45 = vector.multi_reduction <maximumf>, %44, %cst_22 [0] : vector<16x768xf32> to vector<768xf32>
    %46 = vector.shape_cast %45 : vector<768xf32> to vector<1x768xf32>
    %47 = tpu.concatenate %41, %46 in 0 : vector<1x768xf32>, vector<1x768xf32> -> vector<2x768xf32>
    %c0_23 = arith.constant 0 : index
    %c0_24 = arith.constant 0 : index
    %48 = vector.load %arg8[%c0_23, %c0_24] : memref<768x256xbf16, #tpu.memory_space<vmem>>, vector<768x256xbf16>
    %49 = arith.extf %48 : vector<768x256xbf16> to vector<768x256xf32>
    %cst_25 = arith.constant dense<0.000000e+00> : vector<2x256xf32>
    %50 = tpu.matmul %47, %49, %cst_25 {dimension_numbers = #tpu.dot_dimension_numbers<[1], [0], [0], [1], [0, 0, 1, 1], [], []>} : vector<2x768xf32>, vector<768x256xf32>, vector<2x256xf32> -> vector<2x256xf32>
    %c0_26 = arith.constant 0 : index
    %c0_27 = arith.constant 0 : index
    %c0_28 = arith.constant 0 : index
    %51 = vector.load %arg2[%c0_26, %c0_27, %c0_28] : memref<2x1x256xf32, #tpu.memory_space<vmem>>, vector<2x1x256xf32>
    %52 = vector.shape_cast %51 : vector<2x1x256xf32> to vector<2x256xf32>
    %53 = arith.addf %50, %52 : vector<2x256xf32>
    %cst_29 = arith.constant 0.000000e+00 : f32
    %54 = vector.broadcast %cst_29 : f32 to vector<2x256xf32>
    %55 = arith.cmpf oge, %53, %54 : vector<2x256xf32>
    %cst_30 = arith.constant 9.99999974E-6 : f32
    %56 = vector.broadcast %cst_30 : f32 to vector<2x256xf32>
    %57 = arith.mulf %56, %53 : vector<2x256xf32>
    %58 = arith.select %55, %53, %57 : vector<2x256xi1>, vector<2x256xf32>
    %c0_31 = arith.constant 0 : index
    %c0_32 = arith.constant 0 : index
    %59 = vector.load %arg9[%c0_31, %c0_32] : memref<256x1xf32, #tpu.memory_space<vmem>>, vector<256x1xf32>
    %cst_33 = arith.constant dense<0.000000e+00> : vector<2x1xf32>
    %60 = tpu.matmul %58, %59, %cst_33 {dimension_numbers = #tpu.dot_dimension_numbers<[1], [0], [0], [1], [0, 0, 1, 1], [], []>} : vector<2x256xf32>, vector<256x1xf32>, vector<2x1xf32> -> vector<2x1xf32>
    %c0_34 = arith.constant 0 : index
    %c0_35 = arith.constant 0 : index
    %61 = vector.load %arg10[%c0_34, %c0_35] : memref<1x1xf32, #tpu.memory_space<vmem>>, vector<1x1xf32>
    %62 = vector.broadcast %61 : vector<1x1xf32> to vector<2x1xf32>
    %63 = arith.addf %60, %62 : vector<2x1xf32>
    %64 = arith.negf %63 : vector<2x1xf32>
    %65 = math.exp %64 : vector<2x1xf32>
    %cst_36 = arith.constant 1.000000e+00 : f32
    %66 = vector.broadcast %cst_36 : f32 to vector<2x1xf32>
    %67 = arith.addf %66, %65 : vector<2x1xf32>
    %68 = arith.divf %66, %67 : vector<2x1xf32>
    %69 = vector.shape_cast %68 : vector<2x1xf32> to vector<2x1x1xf32>
    %c0_37 = arith.constant 0 : index
    %c0_38 = arith.constant 0 : index
    %c0_39 = arith.constant 0 : index
    %70 = vector.load %arg11[%c0_37, %c0_38, %c0_39] : memref<2x1x1xf32, #tpu.memory_space<vmem>>, vector<2x1x1xf32>
    tpu.vector_store %arg11[%c0_37, %c0_38, %c0_39], %69 {strides = array<i32>} : memref<2x1x1xf32, #tpu.memory_space<vmem>>, vector<2x1x1xf32>,
    return
  }
  func.func @transform_0(%arg0: i32) -> (i32, i32, i32) {
    %c0_i32 = arith.constant 0 : i32
    %c0_i32_0 = arith.constant 0 : i32
    %c0_i32_1 = arith.constant 0 : i32
    return %arg0, %c0_i32, %c0_i32_0 : i32, i32, i32
  }
  func.func @transform_1(%arg0: i32) -> (i32, i32, i32) {
    %c0_i32 = arith.constant 0 : i32
    %c0_i32_0 = arith.constant 0 : i32
    %c0_i32_1 = arith.constant 0 : i32
    return %arg0, %c0_i32, %c0_i32_0 : i32, i32, i32
  }
  func.func @transform_2(%arg0: i32) -> (i32, i32) {
    %c0_i32 = arith.constant 0 : i32
    %c0_i32_0 = arith.constant 0 : i32
    %c0_i32_1 = arith.constant 0 : i32
    return %c0_i32, %c0_i32_0 : i32, i32
  }
  func.func @transform_3(%arg0: i32) -> (i32, i32) {
    %c0_i32 = arith.constant 0 : i32
    %c0_i32_0 = arith.constant 0 : i32
    %c0_i32_1 = arith.constant 0 : i32
    return %c0_i32, %c0_i32_0 : i32, i32
  }
  func.func @transform_4(%arg0: i32) -> (i32, i32) {
    %c0_i32 = arith.constant 0 : i32
    %c0_i32_0 = arith.constant 0 : i32
    %c0_i32_1 = arith.constant 0 : i32
    return %c0_i32, %c0_i32_0 : i32, i32
  }
  func.func @transform_5(%arg0: i32) -> (i32, i32) {
    %c0_i32 = arith.constant 0 : i32
    %c0_i32_0 = arith.constant 0 : i32
    %c0_i32_1 = arith.constant 0 : i32
    return %c0_i32, %c0_i32_0 : i32, i32
  }
  func.func @transform_6(%arg0: i32) -> (i32, i32) {
    %c0_i32 = arith.constant 0 : i32
    %c0_i32_0 = arith.constant 0 : i32
    %c0_i32_1 = arith.constant 0 : i32
    return %c0_i32, %c0_i32_0 : i32, i32
  }
  func.func @transform_7(%arg0: i32) -> (i32, i32) {
    %c0_i32 = arith.constant 0 : i32
    %c0_i32_0 = arith.constant 0 : i32
    %c0_i32_1 = arith.constant 0 : i32
    return %c0_i32, %c0_i32_0 : i32, i32
  }
  func.func @transform_8(%arg0: i32) -> (i32, i32) {
    %c0_i32 = arith.constant 0 : i32
    %c0_i32_0 = arith.constant 0 : i32
    %c0_i32_1 = arith.constant 0 : i32
    return %c0_i32, %c0_i32_0 : i32, i32
  }
  func.func @transform_9(%arg0: i32) -> (i32, i32) {
    %c0_i32 = arith.constant 0 : i32
    %c0_i32_0 = arith.constant 0 : i32
    %c0_i32_1 = arith.constant 0 : i32
    return %c0_i32, %c0_i32_0 : i32, i32
  }
  func.func @transform_10(%arg0: i32) -> (i32, i32, i32) {
    %c0_i32 = arith.constant 0 : i32
    %c0_i32_0 = arith.constant 0 : i32
    %c0_i32_1 = arith.constant 0 : i32
    return %arg0, %c0_i32, %c0_i32_0 : i32, i32, i32
  }
}

</mosaic_0001>

<llo_original>
// kernel: tpu_custom_call.1
$region0: #{tpu_custom_call.1}
  #allocation0 [shape = 'u32[]', space=smem, size = 0x4, offset = 0x4, fixed_abs, tag = 'smem constant byte address 0x4 - core index']
  #allocation1 [shape = 'u32[72,128]{1,0:T(1,128)}', space=vmem, size = 0x9000, scoped, tag = 'internal scratch']
  #allocation2 [shape = 'f32[1,1]{1,0:T(1,128)S(1)}', space=vmem, size = 0x200, scoped, tag = 'scoped memory for tpu_custom_call.1']
  %s0 = inlined_call_operand.vmem [shape: bf16[2,16,768], index: 0, kind: input, shape index: {}]
  %s1 = inlined_call_operand.vmem [shape: f32[2,1,256], index: 1, kind: input, shape index: {}]
  %s2 = inlined_call_operand.vmem [shape: bf16[768,48], index: 2, kind: input, shape index: {}]
  %s3 = inlined_call_operand.vmem [shape: bf16[144,96], index: 3, kind: input, shape index: {}]
  %s4 = inlined_call_operand.vmem [shape: bf16[48,128], index: 4, kind: input, shape index: {}]
  %s5 = inlined_call_operand.vmem [shape: bf16[128,768], index: 5, kind: input, shape index: {}]
  %s6 = inlined_call_operand.vmem [shape: f32[1,768], index: 6, kind: input, shape index: {}]
  %s7 = inlined_call_operand.hbm [shape: bf16[768,256], index: 7, kind: input, shape index: {}]
  %s8 = inlined_call_operand.vmem [shape: f32[256,1], index: 8, kind: input, shape index: {}]
  %s9 = inlined_call_operand.<no memory space> [shape: f32[1,1], index: 9, kind: input, shape index: {}]
  %s10 = inlined_call_operand.vmem [shape: f32[2,1,1], index: 10, kind: output, shape index: {}]
  %s11 = sld [smem:[#allocation0]]
  $region54: #{tpu_custom_call.1} parent=0
    _
  %s13 = ssub.s32 1, %s11
  %s14 = scalar_select 0, %s13, %s11
  %v15 = vstv %s9
  %16 = vst [vmem:[#allocation2] sm:$0x1] %v15
  $region1: #{tpu_custom_call.1} parent=0
    #allocation3 [shape = 'u8[393216]{0}', space=vmem, size = 0x60000, scoped, tag = 'input window, operand 7, single buffered']
    #allocation4 [shape = 's32[1]{0}', space=sflag, size = 0x4, scoped, tag = 'scoped memory for tpu_custom_call.1']
    %17 = vsyncpa [#allocation4], 0
    // Predicated region
    $region2: #{tpu_custom_call.1} parent=1 // pred_check
      _
    $region3: #{tpu_custom_call.1} parent=1 // pred_check_branch
      %19 = sbr.rel (0) target = $region5
    $region4: #{tpu_custom_call.1} parent=1 // pred_region
      _
    $region5: #{tpu_custom_call.1} parent=1 // pred_fallthru
      _
    // Predicated region
    $region6: #{tpu_custom_call.1} parent=1 // pred_check
      _
    $region7: #{tpu_custom_call.1} parent=1 // pred_check_branch
      %21 = sbr.rel (0) target = $region9
    $region8: #{tpu_custom_call.1} parent=1 // pred_region
      _
    $region9: #{tpu_custom_call.1} parent=1 // pred_fallthru
      _
    // Predicated region
    $region10: #{tpu_custom_call.1} parent=1 // pred_check
      _
    $region11: #{tpu_custom_call.1} parent=1 // pred_check_branch
      %23 = sbr.rel (0) target = $region13
    $region12: #{tpu_custom_call.1} parent=1 // pred_region
      _
    $region13: #{tpu_custom_call.1} parent=1 // pred_fallthru
      _
    // Predicated region
    $region14: #{tpu_custom_call.1} parent=1 // pred_check
      _
    $region15: #{tpu_custom_call.1} parent=1 // pred_check_branch
      %25 = sbr.rel (0) target = $region17
    $region16: #{tpu_custom_call.1} parent=1 // pred_region
      _
    $region17: #{tpu_custom_call.1} parent=1 // pred_fallthru
      _
    // Predicated region
    $region18: #{tpu_custom_call.1} parent=1 // pred_check
      _
    $region19: #{tpu_custom_call.1} parent=1 // pred_check_branch
      %27 = sbr.rel (0) target = $region21
    $region20: #{tpu_custom_call.1} parent=1 // pred_region
      _
    $region21: #{tpu_custom_call.1} parent=1 // pred_fallthru
      _
    // Predicated region
    $region22: #{tpu_custom_call.1} parent=1 // pred_check
      _
    $region23: #{tpu_custom_call.1} parent=1 // pred_check_branch
      %29 = sbr.rel (0) target = $region25
    $region24: #{tpu_custom_call.1} parent=1 // pred_region
      _
    $region25: #{tpu_custom_call.1} parent=1 // pred_fallthru
      _
    // Predicated region
    $region26: #{tpu_custom_call.1} parent=1 // pred_check
      _
    $region27: #{tpu_custom_call.1} parent=1 // pred_check_branch
      %31 = sbr.rel (0) target = $region29
    $region28: #{tpu_custom_call.1} parent=1 // pred_region
      _
    $region29: #{tpu_custom_call.1} parent=1 // pred_fallthru
      _
    // Predicated region
    $region30: #{tpu_custom_call.1} parent=1 // pred_check
      _
    $region31: #{tpu_custom_call.1} parent=1 // pred_check_branch
      %33 = sbr.rel (0) target = $region33
    $region32: #{tpu_custom_call.1} parent=1 // pred_region
      %35 = vsyncadd [#allocation4], 0
      %s36 = sshll.u32 %s7, 4
      %s37 = int_to_ptr.hbm [resolvable:$true] %s36
      %s38 = sshll.u32 [#allocation3], 4
      %s39 = int_to_ptr.vmem [resolvable:$true] %s38
      %44 = dma.hbm_to_vmem [thread:$0]  %s37, 12288, %s39, [#allocation4], 128, 128, 8
    $region33: #{tpu_custom_call.1} parent=1 // pred_fallthru
      _
    // Predicated region
    $region34: #{tpu_custom_call.1} parent=1 // pred_check
      _
    $region35: #{tpu_custom_call.1} parent=1 // pred_check_branch
      %46 = sbr.rel (0) target = $region37
    $region36: #{tpu_custom_call.1} parent=1 // pred_region
      _
    $region37: #{tpu_custom_call.1} parent=1 // pred_fallthru
      _
    // Predicated region
    $region38: #{tpu_custom_call.1} parent=1 // pred_check
      _
    $region39: #{tpu_custom_call.1} parent=1 // pred_check_branch
      %48 = sbr.rel (0) target = $region41
    $region40: #{tpu_custom_call.1} parent=1 // pred_region
      _
    $region41: #{tpu_custom_call.1} parent=1 // pred_fallthru
      _
    // Predicated region
    $region42: #{tpu_custom_call.1} parent=1 // pred_check
      _
    $region43: #{tpu_custom_call.1} parent=1 // pred_check_branch
      %50 = sbr.rel (0) target = $region45
    $region44: #{tpu_custom_call.1} parent=1 // pred_region
      %52 = dma.done [#allocation4], 12288
    $region45: #{tpu_custom_call.1} parent=1 // pred_fallthru
      _
    %v53 = vld [vmem:[%s0] sm:$0xff]
    %v54 = vld [vmem:[%s0 + $0x8] sm:$0xff]
    %v55 = vld [vmem:[%s0 + $0x10] sm:$0xff]
    %v56 = vld [vmem:[%s0 + $0x18] sm:$0xff]
    %v57 = vld [vmem:[%s0 + $0x20] sm:$0xff]
    %v58 = vld [vmem:[%s0 + $0x28] sm:$0xff]
    %v59 = vld [vmem:[%s0 + $0x30] sm:$0xff]
    %v60 = vld [vmem:[%s0 + $0x38] sm:$0xff]
    %v61 = vld [vmem:[%s0 + $0x40] sm:$0xff]
    %v62 = vld [vmem:[%s0 + $0x48] sm:$0xff]
    %v63 = vld [vmem:[%s0 + $0x50] sm:$0xff]
    %v64 = vld [vmem:[%s0 + $0x58] sm:$0xff]
    %v65 = vunpack.c.l.bf16 %v53
    %v66 = vunpack.c.h.bf16 %v53
    %v67 = vunpack.c.l.bf16 %v54
    %v68 = vunpack.c.h.bf16 %v54
    %v69 = vunpack.c.l.bf16 %v55
    %v70 = vunpack.c.h.bf16 %v55
    %v71 = vunpack.c.l.bf16 %v56
    %v72 = vunpack.c.h.bf16 %v56
    %v73 = vunpack.c.l.bf16 %v57
    %v74 = vunpack.c.h.bf16 %v57
    %v75 = vunpack.c.l.bf16 %v58
    %v76 = vunpack.c.h.bf16 %v58
    %v77 = vunpack.c.l.bf16 %v59
    %v78 = vunpack.c.h.bf16 %v59
    %v79 = vunpack.c.l.bf16 %v60
    %v80 = vunpack.c.h.bf16 %v60
    %v81 = vunpack.c.l.bf16 %v61
    %v82 = vunpack.c.h.bf16 %v61
    %v83 = vunpack.c.l.bf16 %v62
    %v84 = vunpack.c.h.bf16 %v62
    %v85 = vunpack.c.l.bf16 %v63
    %v86 = vunpack.c.h.bf16 %v63
    %v87 = vunpack.c.l.bf16 %v64
    %v88 = vunpack.c.h.bf16 %v64
    %v89 = vmax.f32 %v65, 0.0
    %v90 = vmax.f32 %v66, 0.0
    %v91 = vmax.f32 %v67, 0.0
    %v92 = vmax.f32 %v68, 0.0
    %v93 = vmax.f32 %v69, 0.0
    %v94 = vmax.f32 %v70, 0.0
    %v95 = vmax.f32 %v71, 0.0
    %v96 = vmax.f32 %v72, 0.0
    %v97 = vmax.f32 %v73, 0.0
    %v98 = vmax.f32 %v74, 0.0
    %v99 = vmax.f32 %v75, 0.0
    %v100 = vmax.f32 %v76, 0.0
    %v101 = vmax.f32 %v77, 0.0
    %v102 = vmax.f32 %v78, 0.0
    %v103 = vmax.f32 %v79, 0.0
    %v104 = vmax.f32 %v80, 0.0
    %v105 = vmax.f32 %v81, 0.0
    %v106 = vmax.f32 %v82, 0.0
    %v107 = vmax.f32 %v83, 0.0
    %v108 = vmax.f32 %v84, 0.0
    %v109 = vmax.f32 %v85, 0.0
    %v110 = vmax.f32 %v86, 0.0
    %v111 = vmax.f32 %v87, 0.0
    %v112 = vmax.f32 %v88, 0.0
    %v113 = vpack.c.bf16 %v90, %v89
    %v114 = vpack.c.bf16 %v92, %v91
    %v115 = vpack.c.bf16 %v94, %v93
    %v116 = vpack.c.bf16 %v96, %v95
    %v117 = vpack.c.bf16 %v98, %v97
    %v118 = vpack.c.bf16 %v100, %v99
    %v119 = vpack.c.bf16 %v102, %v101
    %v120 = vpack.c.bf16 %v104, %v103
    %v121 = vpack.c.bf16 %v106, %v105
    %v122 = vpack.c.bf16 %v108, %v107
    %v123 = vpack.c.bf16 %v110, %v109
    %v124 = vpack.c.bf16 %v112, %v111
    %v125 = vld [vmem:[%s2] sm:$0xf]
    %v126 = vld [vmem:[%s2 + $0x4] sm:$0xf]
    %v127 = vld [vmem:[%s2 + $0x8] sm:$0xf]
    %v128 = vld [vmem:[%s2 + $0xc] sm:$0xf]
    %v129 = vld [vmem:[%s2 + $0x10] sm:$0xf]
    %v130 = vld [vmem:[%s2 + $0x14] sm:$0xf]
    %v131 = vld [vmem:[%s2 + $0x18] sm:$0xf]
    %v132 = vld [vmem:[%s2 + $0x1c] sm:$0xf]
    %v133 = vld [vmem:[%s2 + $0x20] sm:$0xf]
    %v134 = vld [vmem:[%s2 + $0x24] sm:$0xf]
    %v135 = vld [vmem:[%s2 + $0x28] sm:$0xf]
    %v136 = vld [vmem:[%s2 + $0x2c] sm:$0xf]
    %v137 = vld [vmem:[%s2 + $0x30] sm:$0xf]
    %v138 = vld [vmem:[%s2 + $0x34] sm:$0xf]
    %v139 = vld [vmem:[%s2 + $0x38] sm:$0xf]
    %v140 = vld [vmem:[%s2 + $0x3c] sm:$0xf]
    %v141 = vld [vmem:[%s2 + $0x40] sm:$0xf]
    %v142 = vld [vmem:[%s2 + $0x44] sm:$0xf]
    %v143 = vld [vmem:[%s2 + $0x48] sm:$0xf]
    %v144 = vld [vmem:[%s2 + $0x4c] sm:$0xf]
    %v145 = vld [vmem:[%s2 + $0x50] sm:$0xf]
    %v146 = vld [vmem:[%s2 + $0x54] sm:$0xf]
    %v147 = vld [vmem:[%s2 + $0x58] sm:$0xf]
    %v148 = vld [vmem:[%s2 + $0x5c] sm:$0xf]
    %v149 = vld [vmem:[%s2 + $0x60] sm:$0xf]
    %v150 = vld [vmem:[%s2 + $0x64] sm:$0xf]
    %v151 = vld [vmem:[%s2 + $0x68] sm:$0xf]
    %v152 = vld [vmem:[%s2 + $0x6c] sm:$0xf]
    %v153 = vld [vmem:[%s2 + $0x70] sm:$0xf]
    %v154 = vld [vmem:[%s2 + $0x74] sm:$0xf]
    %v155 = vld [vmem:[%s2 + $0x78] sm:$0xf]
    %v156 = vld [vmem:[%s2 + $0x7c] sm:$0xf]
    %v157 = vld [vmem:[%s2 + $0x80] sm:$0xf]
    %v158 = vld [vmem:[%s2 + $0x84] sm:$0xf]
    %v159 = vld [vmem:[%s2 + $0x88] sm:$0xf]
    %v160 = vld [vmem:[%s2 + $0x8c] sm:$0xf]
    %v161 = vld [vmem:[%s2 + $0x90] sm:$0xf]
    %v162 = vld [vmem:[%s2 + $0x94] sm:$0xf]
    %v163 = vld [vmem:[%s2 + $0x98] sm:$0xf]
    %v164 = vld [vmem:[%s2 + $0x9c] sm:$0xf]
    %v165 = vld [vmem:[%s2 + $0xa0] sm:$0xf]
    %v166 = vld [vmem:[%s2 + $0xa4] sm:$0xf]
    %v167 = vld [vmem:[%s2 + $0xa8] sm:$0xf]
    %v168 = vld [vmem:[%s2 + $0xac] sm:$0xf]
    %v169 = vld [vmem:[%s2 + $0xb0] sm:$0xf]
    %v170 = vld [vmem:[%s2 + $0xb4] sm:$0xf]
    %v171 = vld [vmem:[%s2 + $0xb8] sm:$0xf]
    %v172 = vld [vmem:[%s2 + $0xbc] sm:$0xf]
    %v173 = vld [vmem:[%s2 + $0xc0] sm:$0xf]
    %v174 = vld [vmem:[%s2 + $0xc4] sm:$0xf]
    %v175 = vld [vmem:[%s2 + $0xc8] sm:$0xf]
    %v176 = vld [vmem:[%s2 + $0xcc] sm:$0xf]
    %v177 = vld [vmem:[%s2 + $0xd0] sm:$0xf]
    %v178 = vld [vmem:[%s2 + $0xd4] sm:$0xf]
    %v179 = vld [vmem:[%s2 + $0xd8] sm:$0xf]
    %v180 = vld [vmem:[%s2 + $0xdc] sm:$0xf]
    %v181 = vld [vmem:[%s2 + $0xe0] sm:$0xf]
    %v182 = vld [vmem:[%s2 + $0xe4] sm:$0xf]
    %v183 = vld [vmem:[%s2 + $0xe8] sm:$0xf]
    %v184 = vld [vmem:[%s2 + $0xec] sm:$0xf]
    %v185 = vld [vmem:[%s2 + $0xf0] sm:$0xf]
    %v186 = vld [vmem:[%s2 + $0xf4] sm:$0xf]
    %v187 = vld [vmem:[%s2 + $0xf8] sm:$0xf]
    %v188 = vld [vmem:[%s2 + $0xfc] sm:$0xf]
    %v189 = vld [vmem:[%s2 + $0x100] sm:$0xf]
    %v190 = vld [vmem:[%s2 + $0x104] sm:$0xf]
    %v191 = vld [vmem:[%s2 + $0x108] sm:$0xf]
    %v192 = vld [vmem:[%s2 + $0x10c] sm:$0xf]
    %v193 = vld [vmem:[%s2 + $0x110] sm:$0xf]
    %v194 = vld [vmem:[%s2 + $0x114] sm:$0xf]
    %v195 = vld [vmem:[%s2 + $0x118] sm:$0xf]
    %v196 = vld [vmem:[%s2 + $0x11c] sm:$0xf]
    %v197 = vld [vmem:[%s2 + $0x120] sm:$0xf]
    %v198 = vld [vmem:[%s2 + $0x124] sm:$0xf]
    %v199 = vld [vmem:[%s2 + $0x128] sm:$0xf]
    %v200 = vld [vmem:[%s2 + $0x12c] sm:$0xf]
    %v201 = vld [vmem:[%s2 + $0x130] sm:$0xf]
    %v202 = vld [vmem:[%s2 + $0x134] sm:$0xf]
    %v203 = vld [vmem:[%s2 + $0x138] sm:$0xf]
    %v204 = vld [vmem:[%s2 + $0x13c] sm:$0xf]
    %v205 = vld [vmem:[%s2 + $0x140] sm:$0xf]
    %v206 = vld [vmem:[%s2 + $0x144] sm:$0xf]
    %v207 = vld [vmem:[%s2 + $0x148] sm:$0xf]
    %v208 = vld [vmem:[%s2 + $0x14c] sm:$0xf]
    %v209 = vld [vmem:[%s2 + $0x150] sm:$0xf]
    %v210 = vld [vmem:[%s2 + $0x154] sm:$0xf]
    %v211 = vld [vmem:[%s2 + $0x158] sm:$0xf]
    %v212 = vld [vmem:[%s2 + $0x15c] sm:$0xf]
    %v213 = vld [vmem:[%s2 + $0x160] sm:$0xf]
    %v214 = vld [vmem:[%s2 + $0x164] sm:$0xf]
    %v215 = vld [vmem:[%s2 + $0x168] sm:$0xf]
    %v216 = vld [vmem:[%s2 + $0x16c] sm:$0xf]
    %v217 = vld [vmem:[%s2 + $0x170] sm:$0xf]
    %v218 = vld [vmem:[%s2 + $0x174] sm:$0xf]
    %v219 = vld [vmem:[%s2 + $0x178] sm:$0xf]
    %v220 = vld [vmem:[%s2 + $0x17c] sm:$0xf]
    %v233 = vunpack.c.l.b16 %v113
    %v234 = vunpack.c.h.b16 %v113
    %v235 = vunpack.c.l.b16 %v114
    %v236 = vunpack.c.h.b16 %v114
    %v237 = vunpack.c.l.b16 %v115
    %v238 = vunpack.c.h.b16 %v115
    %v239 = vunpack.c.l.b16 %v116
    %v240 = vunpack.c.h.b16 %v116
    %v241 = vunpack.c.l.b16 %v117
    %v242 = vunpack.c.h.b16 %v117
    %v243 = vunpack.c.l.b16 %v118
    %v244 = vunpack.c.h.b16 %v118
    %v245 = vunpack.c.l.b16 %v119
    %v246 = vunpack.c.h.b16 %v119
    %v247 = vunpack.c.l.b16 %v120
    %v248 = vunpack.c.h.b16 %v120
    %v249 = vunpack.c.l.b16 %v121
    %v250 = vunpack.c.h.b16 %v121
    %v251 = vunpack.c.l.b16 %v122
    %v252 = vunpack.c.h.b16 %v122
    %v253 = vunpack.c.l.b16 %v123
    %v254 = vunpack.c.h.b16 %v123
    %v255 = vunpack.c.l.b16 %v124
    %v256 = vunpack.c.h.b16 %v124
    %v257 = vpack.c.b16 %v239, %v233
    %v258 = vpack.c.b16 %v240, %v234
    %v259 = vpack.c.b16 %v241, %v235
    %v260 = vpack.c.b16 %v242, %v236
    %v261 = vpack.c.b16 %v243, %v237
    %v262 = vpack.c.b16 %v244, %v238
    %v263 = vpack.c.b16 %v251, %v245
    %v264 = vpack.c.b16 %v252, %v246
    %v265 = vpack.c.b16 %v253, %v247
    %v266 = vpack.c.b16 %v254, %v248
    %v267 = vpack.c.b16 %v255, %v249
    %v268 = vpack.c.b16 %v256, %v250
    %v377 = vunpack.c.l.b16 %v125
    %v378 = vunpack.c.l.b16 %v126
    %v379 = vunpack.c.l.b16 %v127
    %v380 = vunpack.c.l.b16 %v128
    %v381 = vunpack.c.l.b16 %v129
    %v382 = vunpack.c.l.b16 %v130
    %v383 = vunpack.c.l.b16 %v131
    %v384 = vunpack.c.l.b16 %v132
    %v385 = vunpack.c.l.b16 %v133
    %v386 = vunpack.c.l.b16 %v134
    %v387 = vunpack.c.l.b16 %v135
    %v388 = vunpack.c.l.b16 %v136
    %v389 = vunpack.c.l.b16 %v137
    %v390 = vunpack.c.l.b16 %v138
    %v391 = vunpack.c.l.b16 %v139
    %v392 = vunpack.c.l.b16 %v140
    %v393 = vunpack.c.l.b16 %v141
    %v394 = vunpack.c.l.b16 %v142
    %v395 = vunpack.c.l.b16 %v143
    %v396 = vunpack.c.l.b16 %v144
    %v397 = vunpack.c.l.b16 %v145
    %v398 = vunpack.c.l.b16 %v146
    %v399 = vunpack.c.l.b16 %v147
    %v400 = vunpack.c.l.b16 %v148
    %v401 = vunpack.c.l.b16 %v149
    %v402 = vunpack.c.l.b16 %v150
    %v403 = vunpack.c.l.b16 %v151
    %v404 = vunpack.c.l.b16 %v152
    %v405 = vunpack.c.l.b16 %v153
    %v406 = vunpack.c.l.b16 %v154
    %v407 = vunpack.c.l.b16 %v155
    %v408 = vunpack.c.l.b16 %v156
    %v409 = vunpack.c.l.b16 %v157
    %v410 = vunpack.c.l.b16 %v158
    %v411 = vunpack.c.l.b16 %v159
    %v412 = vunpack.c.l.b16 %v160
    %v413 = vunpack.c.l.b16 %v161
    %v414 = vunpack.c.l.b16 %v162
    %v415 = vunpack.c.l.b16 %v163
    %v416 = vunpack.c.l.b16 %v164
    %v417 = vunpack.c.l.b16 %v165
    %v418 = vunpack.c.l.b16 %v166
    %v419 = vunpack.c.l.b16 %v167
    %v420 = vunpack.c.l.b16 %v168
    %v421 = vunpack.c.l.b16 %v169
    %v422 = vunpack.c.l.b16 %v170
    %v423 = vunpack.c.l.b16 %v171
    %v424 = vunpack.c.l.b16 %v172
    %v425 = vunpack.c.l.b16 %v173
    %v426 = vunpack.c.l.b16 %v174
    %v427 = vunpack.c.l.b16 %v175
    %v428 = vunpack.c.l.b16 %v176
    %v429 = vunpack.c.l.b16 %v177
    %v430 = vunpack.c.l.b16 %v178
    %v431 = vunpack.c.l.b16 %v179
    %v432 = vunpack.c.l.b16 %v180
    %v433 = vunpack.c.l.b16 %v181
    %v434 = vunpack.c.l.b16 %v182
    %v435 = vunpack.c.l.b16 %v183
    %v436 = vunpack.c.l.b16 %v184
    %v437 = vunpack.c.l.b16 %v185
    %v438 = vunpack.c.l.b16 %v186
    %v439 = vunpack.c.l.b16 %v187
    %v440 = vunpack.c.l.b16 %v188
    %v441 = vunpack.c.l.b16 %v189
    %v442 = vunpack.c.l.b16 %v190
    %v443 = vunpack.c.l.b16 %v191
    %v444 = vunpack.c.l.b16 %v192
    %v445 = vunpack.c.l.b16 %v193
    %v446 = vunpack.c.l.b16 %v194
    %v447 = vunpack.c.l.b16 %v195
    %v448 = vunpack.c.l.b16 %v196
    %v449 = vunpack.c.l.b16 %v197
    %v450 = vunpack.c.l.b16 %v198
    %v451 = vunpack.c.l.b16 %v199
    %v452 = vunpack.c.l.b16 %v200
    %v453 = vunpack.c.l.b16 %v201
    %v454 = vunpack.c.l.b16 %v202
    %v455 = vunpack.c.l.b16 %v203
    %v456 = vunpack.c.l.b16 %v204
    %v457 = vunpack.c.l.b16 %v205
    %v458 = vunpack.c.l.b16 %v206
    %v459 = vunpack.c.l.b16 %v207
    %v460 = vunpack.c.l.b16 %v208
    %v461 = vunpack.c.l.b16 %v209
    %v462 = vunpack.c.l.b16 %v210
    %v463 = vunpack.c.l.b16 %v211
    %v464 = vunpack.c.l.b16 %v212
    %v465 = vunpack.c.l.b16 %v213
    %v466 = vunpack.c.l.b16 %v214
    %v467 = vunpack.c.l.b16 %v215
    %v468 = vunpack.c.l.b16 %v216
    %v469 = vunpack.c.l.b16 %v217
    %v470 = vunpack.c.l.b16 %v218
    %v471 = vunpack.c.l.b16 %v219
    %v472 = vunpack.c.l.b16 %v220
    %v473 = vpack.c.b16 %v378, %v377
    %v474 = vpack.c.b16 %v380, %v379
    %v475 = vpack.c.b16 %v382, %v381
    %v476 = vpack.c.b16 %v384, %v383
    %v477 = vpack.c.b16 %v386, %v385
    %v478 = vpack.c.b16 %v388, %v387
    %v479 = vpack.c.b16 %v390, %v389
    %v480 = vpack.c.b16 %v392, %v391
    %v481 = vpack.c.b16 %v394, %v393
    %v482 = vpack.c.b16 %v396, %v395
    %v483 = vpack.c.b16 %v398, %v397
    %v484 = vpack.c.b16 %v400, %v399
    %v485 = vpack.c.b16 %v402, %v401
    %v486 = vpack.c.b16 %v404, %v403
    %v487 = vpack.c.b16 %v406, %v405
    %v488 = vpack.c.b16 %v408, %v407
    %v489 = vpack.c.b16 %v410, %v409
    %v490 = vpack.c.b16 %v412, %v411
    %v491 = vpack.c.b16 %v414, %v413
    %v492 = vpack.c.b16 %v416, %v415
    %v493 = vpack.c.b16 %v418, %v417
    %v494 = vpack.c.b16 %v420, %v419
    %v495 = vpack.c.b16 %v422, %v421
    %v496 = vpack.c.b16 %v424, %v423
    %v497 = vpack.c.b16 %v426, %v425
    %v498 = vpack.c.b16 %v428, %v427
    %v499 = vpack.c.b16 %v430, %v429
    %v500 = vpack.c.b16 %v432, %v431
    %v501 = vpack.c.b16 %v434, %v433
    %v502 = vpack.c.b16 %v436, %v435
    %v503 = vpack.c.b16 %v438, %v437
    %v504 = vpack.c.b16 %v440, %v439
    %v505 = vpack.c.b16 %v442, %v441
    %v506 = vpack.c.b16 %v444, %v443
    %v507 = vpack.c.b16 %v446, %v445
    %v508 = vpack.c.b16 %v448, %v447
    %v509 = vpack.c.b16 %v450, %v449
    %v510 = vpack.c.b16 %v452, %v451
    %v511 = vpack.c.b16 %v454, %v453
    %v512 = vpack.c.b16 %v456, %v455
    %v513 = vpack.c.b16 %v458, %v457
    %v514 = vpack.c.b16 %v460, %v459
    %v515 = vpack.c.b16 %v462, %v461
    %v516 = vpack.c.b16 %v464, %v463
    %v517 = vpack.c.b16 %v466, %v465
    %v518 = vpack.c.b16 %v468, %v467
    %v519 = vpack.c.b16 %v470, %v469
    %v520 = vpack.c.b16 %v472, %v471
    %569 = vmatpush.bf16.msra.mxu0 %v480
    %570 = vmatpush.bf16.msra.mxu0 %v479
    %571 = vmatpush.bf16.msra.mxu0 %v478
    %572 = vmatpush.bf16.msra.mxu0 %v477
    %573 = vmatpush.bf16.msra.mxu0 %v476
    %574 = vmatpush.bf16.msra.mxu0 %v475
    %575 = vmatpush.bf16.msra.mxu0 %v474
    %576 = vmatpush.bf16.msra.mxu0 %v473
    %577 = vmatmul.bf16.gmra.mxu0 %v257
    %v578 = vpop.f32.mrf.mxu0
    %v579 = vadd.f32 0.0, %v578
    %v580 = vpop.f32.mrf.mxu0
    %v581 = vadd.f32 0.0, %v580
    %582 = vmatmul.bf16.gmra.mxu0 %v263
    %v583 = vpop.f32.mrf.mxu0
    %v584 = vadd.f32 0.0, %v583
    %v585 = vpop.f32.mrf.mxu0
    %v586 = vadd.f32 0.0, %v585
    %587 = vdwg.mxu0
    %588 = vmatpush.bf16.msra.mxu0 %v488
    %589 = vmatpush.bf16.msra.mxu0 %v487
    %590 = vmatpush.bf16.msra.mxu0 %v486
    %591 = vmatpush.bf16.msra.mxu0 %v485
    %592 = vmatpush.bf16.msra.mxu0 %v484
    %593 = vmatpush.bf16.msra.mxu0 %v483
    %594 = vmatpush.bf16.msra.mxu0 %v482
    %595 = vmatpush.bf16.msra.mxu0 %v481
    %596 = vmatmul.bf16.gmra.mxu0 %v258
    %v597 = vpop.f32.mrf.mxu0
    %v598 = vadd.f32 %v579, %v597
    %v599 = vpop.f32.mrf.mxu0
    %v600 = vadd.f32 %v581, %v599
    %601 = vmatmul.bf16.gmra.mxu0 %v264
    %v602 = vpop.f32.mrf.mxu0
    %v603 = vadd.f32 %v584, %v602
    %v604 = vpop.f32.mrf.mxu0
    %v605 = vadd.f32 %v586, %v604
    %606 = vdwg.mxu0
    %607 = vmatpush.bf16.msra.mxu0 %v496
    %608 = vmatpush.bf16.msra.mxu0 %v495
    %609 = vmatpush.bf16.msra.mxu0 %v494
    %610 = vmatpush.bf16.msra.mxu0 %v493
    %611 = vmatpush.bf16.msra.mxu0 %v492
    %612 = vmatpush.bf16.msra.mxu0 %v491
    %613 = vmatpush.bf16.msra.mxu0 %v490
    %614 = vmatpush.bf16.msra.mxu0 %v489
    %615 = vmatmul.bf16.gmra.mxu0 %v259
    %v616 = vpop.f32.mrf.mxu0
    %v617 = vadd.f32 %v598, %v616
    %v618 = vpop.f32.mrf.mxu0
    %v619 = vadd.f32 %v600, %v618
    %620 = vmatmul.bf16.gmra.mxu0 %v265
    %v621 = vpop.f32.mrf.mxu0
    %v622 = vadd.f32 %v603, %v621
    %v623 = vpop.f32.mrf.mxu0
    %v624 = vadd.f32 %v605, %v623
    %625 = vdwg.mxu0
    %626 = vmatpush.bf16.msra.mxu0 %v504
    %627 = vmatpush.bf16.msra.mxu0 %v503
    %628 = vmatpush.bf16.msra.mxu0 %v502
    %629 = vmatpush.bf16.msra.mxu0 %v501
    %630 = vmatpush.bf16.msra.mxu0 %v500
    %631 = vmatpush.bf16.msra.mxu0 %v499
    %632 = vmatpush.bf16.msra.mxu0 %v498
    %633 = vmatpush.bf16.msra.mxu0 %v497
    %634 = vmatmul.bf16.gmra.mxu0 %v260
    %v635 = vpop.f32.mrf.mxu0
    %v636 = vadd.f32 %v617, %v635
    %v637 = vpop.f32.mrf.mxu0
    %v638 = vadd.f32 %v619, %v637
    %639 = vmatmul.bf16.gmra.mxu0 %v266
    %v640 = vpop.f32.mrf.mxu0
    %v641 = vadd.f32 %v622, %v640
    %v642 = vpop.f32.mrf.mxu0
    %v643 = vadd.f32 %v624, %v642
    %644 = vdwg.mxu0
    %645 = vmatpush.bf16.msra.mxu0 %v512
    %646 = vmatpush.bf16.msra.mxu0 %v511
    %647 = vmatpush.bf16.msra.mxu0 %v510
    %648 = vmatpush.bf16.msra.mxu0 %v509
    %649 = vmatpush.bf16.msra.mxu0 %v508
    %650 = vmatpush.bf16.msra.mxu0 %v507
    %651 = vmatpush.bf16.msra.mxu0 %v506
    %652 = vmatpush.bf16.msra.mxu0 %v505
    %653 = vmatmul.bf16.gmra.mxu0 %v261
    %v654 = vpop.f32.mrf.mxu0
    %v655 = vadd.f32 %v636, %v654
    %v656 = vpop.f32.mrf.mxu0
    %v657 = vadd.f32 %v638, %v656
    %658 = vmatmul.bf16.gmra.mxu0 %v267
    %v659 = vpop.f32.mrf.mxu0
    %v660 = vadd.f32 %v641, %v659
    %v661 = vpop.f32.mrf.mxu0
    %v662 = vadd.f32 %v643, %v661
    %663 = vdwg.mxu0
    %664 = vmatpush.bf16.msra.mxu0 %v520
    %665 = vmatpush.bf16.msra.mxu0 %v519
    %666 = vmatpush.bf16.msra.mxu0 %v518
    %667 = vmatpush.bf16.msra.mxu0 %v517
    %668 = vmatpush.bf16.msra.mxu0 %v516
    %669 = vmatpush.bf16.msra.mxu0 %v515
    %670 = vmatpush.bf16.msra.mxu0 %v514
    %671 = vmatpush.bf16.msra.mxu0 %v513
    %672 = vmatmul.bf16.gmra.mxu0 %v262
    %v673 = vpop.f32.mrf.mxu0
    %v674 = vadd.f32 %v655, %v673
    %v675 = vpop.f32.mrf.mxu0
    %v676 = vadd.f32 %v657, %v675
    %677 = vmatmul.bf16.gmra.mxu0 %v268
    %v678 = vpop.f32.mrf.mxu0
    %v679 = vadd.f32 %v660, %v678
    %v680 = vpop.f32.mrf.mxu0
    %v681 = vadd.f32 %v662, %v680
    %682 = vdwg.mxu0
    %v683 = vrot.slane %v674, 1
    %v684 = vrot.slane %v676, 1
    %v685 = vrot.slane %v679, 1
    %v686 = vrot.slane %v681, 1
    %v687 = vlaneseq
    %v688 = vshrl.u32 %v687, 7
    %vm689 = vcmp.lt.s32.totalorder %v688, 7
    %v690 = vsel %vm689, %v685, %v686
    %v691 = vsel %vm689, %v684, %v685
    %v692 = vsel %vm689, %v683, %v684
    %v693 = vsel %vm689, %v686, %v683
    %v694 = vrot.slane %v674, 2
    %v695 = vrot.slane %v676, 2
    %v696 = vrot.slane %v679, 2
    %v697 = vrot.slane %v681, 2
    %vm698 = vcmp.lt.s32.totalorder %v688, 6
    %v699 = vsel %vm698, %v696, %v697
    %v700 = vsel %vm698, %v695, %v696
    %v701 = vsel %vm698, %v694, %v695
    %v702 = vsel %vm698, %v697, %v694
    %707 = vrot.lane.b32.xlu0 %v692, 48
    %v708 = vpop.permute.xlu0 %707
    %709 = vrot.lane.b32.xlu0 %v691, 48
    %v710 = vpop.permute.xlu0 %709
    %711 = vrot.lane.b32.xlu0 %v690, 48
    %v712 = vpop.permute.xlu0 %711
    %713 = vrot.lane.b32.xlu0 %v693, 48
    %v714 = vpop.permute.xlu0 %713
    %723 = vrot.lane.b32.xlu0 %v701, 96
    %v724 = vpop.permute.xlu0 %723
    %725 = vrot.lane.b32.xlu0 %v700, 96
    %v726 = vpop.permute.xlu0 %725
    %727 = vrot.lane.b32.xlu0 %v699, 96
    %v728 = vpop.permute.xlu0 %727
    %729 = vrot.lane.b32.xlu0 %v702, 96
    %v730 = vpop.permute.xlu0 %729
    %vm735 = vcmask 392192
    %v736 = vsel %vm735, %v674, %v708
    %v737 = vsel %vm735, %v676, %v710
    %v738 = vsel %vm735, %v679, %v712
    %v739 = vsel %vm735, %v681, %v714
    %vm740 = vcmask 785408
    %v741 = vsel %vm740, %v736, %v724
    %v742 = vsel %vm740, %v737, %v726
    %v743 = vsel %vm740, %v738, %v728
    %v744 = vsel %vm740, %v739, %v730
    %v745 = vld [vmem:[%s3] sm:$0xf]
    %v746 = vld [vmem:[%s3 + $0x4] sm:$0xf]
    %v747 = vld [vmem:[%s3 + $0x8] sm:$0xf]
    %v748 = vld [vmem:[%s3 + $0xc] sm:$0xf]
    %v749 = vld [vmem:[%s3 + $0x10] sm:$0xf]
    %v750 = vld [vmem:[%s3 + $0x14] sm:$0xf]
    %v751 = vld [vmem:[%s3 + $0x18] sm:$0xf]
    %v752 = vld [vmem:[%s3 + $0x1c] sm:$0xf]
    %v753 = vld [vmem:[%s3 + $0x20] sm:$0xf]
    %v754 = vld [vmem:[%s3 + $0x24] sm:$0xf]
    %v755 = vld [vmem:[%s3 + $0x28] sm:$0xf]
    %v756 = vld [vmem:[%s3 + $0x2c] sm:$0xf]
    %v757 = vld [vmem:[%s3 + $0x30] sm:$0xf]
    %v758 = vld [vmem:[%s3 + $0x34] sm:$0xf]
    %v759 = vld [vmem:[%s3 + $0x38] sm:$0xf]
    %v760 = vld [vmem:[%s3 + $0x3c] sm:$0xf]
    %v761 = vld [vmem:[%s3 + $0x40] sm:$0xf]
    %v762 = vld [vmem:[%s3 + $0x44] sm:$0xf]
    %v763 = vunpack.c.l.bf16 %v745
    %v764 = vunpack.c.l.bf16 %v746
    %v765 = vunpack.c.l.bf16 %v747
    %v766 = vunpack.c.l.bf16 %v748
    %v767 = vunpack.c.l.bf16 %v749
    %v768 = vunpack.c.l.bf16 %v750
    %v769 = vunpack.c.l.bf16 %v751
    %v770 = vunpack.c.l.bf16 %v752
    %v771 = vunpack.c.l.bf16 %v753
    %v772 = vunpack.c.l.bf16 %v754
    %v773 = vunpack.c.l.bf16 %v755
    %v774 = vunpack.c.l.bf16 %v756
    %v775 = vunpack.c.l.bf16 %v757
    %v776 = vunpack.c.l.bf16 %v758
    %v777 = vunpack.c.l.bf16 %v759
    %v778 = vunpack.c.l.bf16 %v760
    %v779 = vunpack.c.l.bf16 %v761
    %v780 = vunpack.c.l.bf16 %v762
    %vm781 = vcmask 130048
    %v782 = vsel %vm781, %v724, 0
    %v784 = vsel %vm781, %v726, 0
    %v786 = vsel %vm781, %v728, 0
    %v788 = vsel %vm781, %v730, 0
    %790 = vmatpush.msra.mxu0 %v778
    %791 = vmatpush.msra.mxu0 %v777
    %792 = vmatpush.msra.mxu0 %v776
    %793 = vmatpush.msra.mxu0 %v775
    %794 = vmatpush.msra.mxu0 %v774
    %795 = vmatpush.msra.mxu0 %v773
    %796 = vmatpush.msra.mxu0 %v772
    %797 = vmatpush.msra.mxu0 %v771
    %798 = vmatpush.msra.mxu0 %v770
    %799 = vmatpush.msra.mxu0 %v769
    %800 = vmatpush.msra.mxu0 %v768
    %801 = vmatpush.msra.mxu0 %v767
    %802 = vmatpush.msra.mxu0 %v766
    %803 = vmatpush.msra.mxu0 %v765
    %804 = vmatpush.msra.mxu0 %v764
    %805 = vmatpush.msra.mxu0 %v763
    %806 = vmatmul.f32.gmra.mxu0 %v741
    %v807 = vpop.f32.mrf.mxu0
    %v808 = vadd.f32 0.0, %v807
    %809 = vmatmul.f32.gmra.mxu0 %v742
    %v810 = vpop.f32.mrf.mxu0
    %v811 = vadd.f32 0.0, %v810
    %812 = vmatmul.f32.gmra.mxu0 %v743
    %v813 = vpop.f32.mrf.mxu0
    %v814 = vadd.f32 0.0, %v813
    %815 = vmatmul.f32.gmra.mxu0 %v744
    %v816 = vpop.f32.mrf.mxu0
    %v817 = vadd.f32 0.0, %v816
    %818 = vdwg.mxu0
    %819 = vmatpush.msra.mxu0 0.0
    %820 = vmatpush.msra.mxu0 0.0
    %821 = vmatpush.msra.mxu0 0.0
    %822 = vmatpush.msra.mxu0 0.0
    %823 = vmatpush.msra.mxu0 0.0
    %824 = vmatpush.msra.mxu0 0.0
    %825 = vmatpush.msra.mxu0 0.0
    %826 = vmatpush.msra.mxu0 0.0
    %827 = vmatpush.msra.mxu0 0.0
    %828 = vmatpush.msra.mxu0 0.0
    %829 = vmatpush.msra.mxu0 0.0
    %830 = vmatpush.msra.mxu0 0.0
    %831 = vmatpush.msra.mxu0 0.0
    %832 = vmatpush.msra.mxu0 0.0
    %833 = vmatpush.msra.mxu0 %v780
    %834 = vmatpush.msra.mxu0 %v779
    %835 = vmatmul.f32.gmra.mxu0 %v782
    %v836 = vpop.f32.mrf.mxu0
    %v837 = vadd.f32 %v808, %v836
    %838 = vmatmul.f32.gmra.mxu0 %v784
    %v839 = vpop.f32.mrf.mxu0
    %v840 = vadd.f32 %v811, %v839
    %841 = vmatmul.f32.gmra.mxu0 %v786
    %v842 = vpop.f32.mrf.mxu0
    %v843 = vadd.f32 %v814, %v842
    %844 = vmatmul.f32.gmra.mxu0 %v788
    %v845 = vpop.f32.mrf.mxu0
    %v846 = vadd.f32 %v817, %v845
    %847 = vdwg.mxu0
    %v848 = vtanh.pop %v837
    %v849 = vtanh.pop %v840
    %v850 = vtanh.pop %v843
    %v851 = vtanh.pop %v846
    %v852 = vxor.u32 %v837, 2147483648
    %v853 = vxor.u32 %v840, 2147483648
    %v854 = vxor.u32 %v843, 2147483648
    %v855 = vxor.u32 %v846, 2147483648
    %v856 = vmul.f32 %v852, 1.442695
    %v857 = vpow.pop %v856
    %v858 = vmul.f32 %v853, 1.442695
    %v859 = vpow.pop %v858
    %v860 = vmul.f32 %v854, 1.442695
    %v861 = vpow.pop %v860
    %v862 = vmul.f32 %v855, 1.442695
    %v863 = vpow.pop %v862
    %v864 = vadd.f32 %v857, 1.0
    %v865 = vadd.f32 %v859, 1.0
    %v866 = vadd.f32 %v861, 1.0
    %v867 = vadd.f32 %v863, 1.0
    %v868 = vrcp.pop %v864
    %v869 = vmul.f32 %v864, %v868
    %v870 = vsub.f32 1.0, %v869
    %v871 = vmul.f32 %v868, %v870
    %v872 = vadd.f32 %v868, %v871
    %vm873 = vweird.f32 %v864
    %vm874 = vweird.f32 %v868
    %vm875 = vmor %vm873, %vm874
    %v876 = vsel %vm875, %v868, %v872
    %v877 = vand.u32 2147483647, %v864
    %vm878 = vcmp.eq.f32.partialorder %v877, 8.507059e+37
    %v879 = vand.u32 %v864, 2147483648
    %v880 = vor.u32 1.1754944e-38, %v879
    %v881 = vsel %vm878, %v880, %v876
    %v882 = vmul.f32 1.0, %v881
    %v883 = vrcp.pop %v865
    %v884 = vmul.f32 %v865, %v883
    %v885 = vsub.f32 1.0, %v884
    %v886 = vmul.f32 %v883, %v885
    %v887 = vadd.f32 %v883, %v886
    %vm888 = vweird.f32 %v865
    %vm889 = vweird.f32 %v883
    %vm890 = vmor %vm888, %vm889
    %v891 = vsel %vm890, %v883, %v887
    %v892 = vand.u32 2147483647, %v865
    %vm893 = vcmp.eq.f32.partialorder %v892, 8.507059e+37
    %v894 = vand.u32 %v865, 2147483648
    %v895 = vor.u32 1.1754944e-38, %v894
    %v896 = vsel %vm893, %v895, %v891
    %v897 = vmul.f32 1.0, %v896
    %v898 = vrcp.pop %v866
    %v899 = vmul.f32 %v866, %v898
    %v900 = vsub.f32 1.0, %v899
    %v901 = vmul.f32 %v898, %v900
    %v902 = vadd.f32 %v898, %v901
    %vm903 = vweird.f32 %v866
    %vm904 = vweird.f32 %v898
    %vm905 = vmor %vm903, %vm904
    %v906 = vsel %vm905, %v898, %v902
    %v907 = vand.u32 2147483647, %v866
    %vm908 = vcmp.eq.f32.partialorder %v907, 8.507059e+37
    %v909 = vand.u32 %v866, 2147483648
    %v910 = vor.u32 1.1754944e-38, %v909
    %v911 = vsel %vm908, %v910, %v906
    %v912 = vmul.f32 1.0, %v911
    %v913 = vrcp.pop %v867
    %v914 = vmul.f32 %v867, %v913
    %v915 = vsub.f32 1.0, %v914
    %v916 = vmul.f32 %v913, %v915
    %v917 = vadd.f32 %v913, %v916
    %vm918 = vweird.f32 %v867
    %vm919 = vweird.f32 %v913
    %vm920 = vmor %vm918, %vm919
    %v921 = vsel %vm920, %v913, %v917
    %v922 = vand.u32 2147483647, %v867
    %vm923 = vcmp.eq.f32.partialorder %v922, 8.507059e+37
    %v924 = vand.u32 %v867, 2147483648
    %v925 = vor.u32 1.1754944e-38, %v924
    %v926 = vsel %vm923, %v925, %v921
    %v927 = vmul.f32 1.0, %v926
    %932 = vrot.lane.b32.xlu0 %v882, 80
    %v933 = vpop.permute.xlu0 %932
    %934 = vrot.lane.b32.xlu0 %v897, 80
    %v935 = vpop.permute.xlu0 %934
    %936 = vrot.lane.b32.xlu0 %v912, 80
    %v937 = vpop.permute.xlu0 %936
    %938 = vrot.lane.b32.xlu0 %v927, 80
    %v939 = vpop.permute.xlu0 %938
    %v944 = vmul.f32 %v848, %v933
    %v945 = vmul.f32 %v849, %v935
    %v946 = vmul.f32 %v850, %v937
    %v947 = vmul.f32 %v851, %v939
    %v948 = vld [vmem:[%s4] sm:$0xf]
    %v949 = vld [vmem:[%s4 + $0x4] sm:$0xf]
    %v950 = vld [vmem:[%s4 + $0x8] sm:$0xf]
    %v951 = vld [vmem:[%s4 + $0xc] sm:$0xf]
    %v952 = vld [vmem:[%s4 + $0x10] sm:$0xf]
    %v953 = vld [vmem:[%s4 + $0x14] sm:$0xf]
    %v954 = vunpack.c.l.bf16 %v948
    %v955 = vunpack.c.l.bf16 %v949
    %v956 = vunpack.c.l.bf16 %v950
    %v957 = vunpack.c.l.bf16 %v951
    %v958 = vunpack.c.l.bf16 %v952
    %v959 = vunpack.c.l.bf16 %v953
    %v961 = vsel %vm735, %v944, 0
    %v964 = vsel %vm735, %v945, 0
    %v967 = vsel %vm735, %v946, 0
    %v970 = vsel %vm735, %v947, 0
    %972 = vmatpush.msra.mxu0 0.0
    %973 = vmatpush.msra.mxu0 0.0
    %974 = vmatpush.msra.mxu0 0.0
    %975 = vmatpush.msra.mxu0 0.0
    %976 = vmatpush.msra.mxu0 0.0
    %977 = vmatpush.msra.mxu0 0.0
    %978 = vmatpush.msra.mxu0 0.0
    %979 = vmatpush.msra.mxu0 0.0
    %980 = vmatpush.msra.mxu0 0.0
    %981 = vmatpush.msra.mxu0 0.0
    %982 = vmatpush.msra.mxu0 %v959
    %983 = vmatpush.msra.mxu0 %v958
    %984 = vmatpush.msra.mxu0 %v957
    %985 = vmatpush.msra.mxu0 %v956
    %986 = vmatpush.msra.mxu0 %v955
    %987 = vmatpush.msra.mxu0 %v954
    %988 = vmatmul.f32.gmra.mxu0 %v961
    %v989 = vpop.f32.mrf.mxu0
    %v990 = vadd.f32 0.0, %v989
    %991 = vmatmul.f32.gmra.mxu0 %v964
    %v992 = vpop.f32.mrf.mxu0
    %v993 = vadd.f32 0.0, %v992
    %994 = vmatmul.f32.gmra.mxu0 %v967
    %v995 = vpop.f32.mrf.mxu0
    %v996 = vadd.f32 0.0, %v995
    %997 = vmatmul.f32.gmra.mxu0 %v970
    %v998 = vpop.f32.mrf.mxu0
    %v999 = vadd.f32 0.0, %v998
    %1000 = vdwg.mxu0
    %v1001 = vmax.f32 %v990, 0.0
    %v1002 = vmax.f32 %v993, 0.0
    %v1003 = vmax.f32 %v996, 0.0
    %v1004 = vmax.f32 %v999, 0.0
    %v1005 = vld [vmem:[%s5] sm:$0xff]
    %v1006 = vld [vmem:[%s5 + $0x8] sm:$0xff]
    %v1007 = vld [vmem:[%s5 + $0x10] sm:$0xff]
    %v1008 = vld [vmem:[%s5 + $0x18] sm:$0xff]
    %v1009 = vld [vmem:[%s5 + $0x20] sm:$0xff]
    %v1010 = vld [vmem:[%s5 + $0x28] sm:$0xff]
    %v1011 = vld [vmem:[%s5 + $0x30] sm:$0xff]
    %v1012 = vld [vmem:[%s5 + $0x38] sm:$0xff]
    %v1013 = vld [vmem:[%s5 + $0x40] sm:$0xff]
    %v1014 = vld [vmem:[%s5 + $0x48] sm:$0xff]
    %v1015 = vld [vmem:[%s5 + $0x50] sm:$0xff]
    %v1016 = vld [vmem:[%s5 + $0x58] sm:$0xff]
    %v1017 = vld [vmem:[%s5 + $0x60] sm:$0xff]
    %v1018 = vld [vmem:[%s5 + $0x68] sm:$0xff]
    %v1019 = vld [vmem:[%s5 + $0x70] sm:$0xff]
    %v1020 = vld [vmem:[%s5 + $0x78] sm:$0xff]
    %v1021 = vld [vmem:[%s5 + $0x80] sm:$0xff]
    %v1022 = vld [vmem:[%s5 + $0x88] sm:$0xff]
    %v1023 = vld [vmem:[%s5 + $0x90] sm:$0xff]
    %v1024 = vld [vmem:[%s5 + $0x98] sm:$0xff]
    %v1025 = vld [vmem:[%s5 + $0xa0] sm:$0xff]
    %v1026 = vld [vmem:[%s5 + $0xa8] sm:$0xff]
    %v1027 = vld [vmem:[%s5 + $0xb0] sm:$0xff]
    %v1028 = vld [vmem:[%s5 + $0xb8] sm:$0xff]
    %v1029 = vld [vmem:[%s5 + $0xc0] sm:$0xff]
    %v1030 = vld [vmem:[%s5 + $0xc8] sm:$0xff]
    %v1031 = vld [vmem:[%s5 + $0xd0] sm:$0xff]
    %v1032 = vld [vmem:[%s5 + $0xd8] sm:$0xff]
    %v1033 = vld [vmem:[%s5 + $0xe0] sm:$0xff]
    %v1034 = vld [vmem:[%s5 + $0xe8] sm:$0xff]
    %v1035 = vld [vmem:[%s5 + $0xf0] sm:$0xff]
    %v1036 = vld [vmem:[%s5 + $0xf8] sm:$0xff]
    %v1037 = vld [vmem:[%s5 + $0x100] sm:$0xff]
    %v1038 = vld [vmem:[%s5 + $0x108] sm:$0xff]
    %v1039 = vld [vmem:[%s5 + $0x110] sm:$0xff]
    %v1040 = vld [vmem:[%s5 + $0x118] sm:$0xff]
    %v1041 = vld [vmem:[%s5 + $0x120] sm:$0xff]
    %v1042 = vld [vmem:[%s5 + $0x128] sm:$0xff]
    %v1043 = vld [vmem:[%s5 + $0x130] sm:$0xff]
    %v1044 = vld [vmem:[%s5 + $0x138] sm:$0xff]
    %v1045 = vld [vmem:[%s5 + $0x140] sm:$0xff]
    %v1046 = vld [vmem:[%s5 + $0x148] sm:$0xff]
    %v1047 = vld [vmem:[%s5 + $0x150] sm:$0xff]
    %v1048 = vld [vmem:[%s5 + $0x158] sm:$0xff]
    %v1049 = vld [vmem:[%s5 + $0x160] sm:$0xff]
    %v1050 = vld [vmem:[%s5 + $0x168] sm:$0xff]
    %v1051 = vld [vmem:[%s5 + $0x170] sm:$0xff]
    %v1052 = vld [vmem:[%s5 + $0x178] sm:$0xff]
    %v1053 = vunpack.c.l.bf16 %v1005
    %v1054 = vunpack.c.h.bf16 %v1005
    %v1055 = vunpack.c.l.bf16 %v1006
    %v1056 = vunpack.c.h.bf16 %v1006
    %v1057 = vunpack.c.l.bf16 %v1007
    %v1058 = vunpack.c.h.bf16 %v1007
    %v1059 = vunpack.c.l.bf16 %v1008
    %v1060 = vunpack.c.h.bf16 %v1008
    %v1061 = vunpack.c.l.bf16 %v1009
    %v1062 = vunpack.c.h.bf16 %v1009
    %v1063 = vunpack.c.l.bf16 %v1010
    %v1064 = vunpack.c.h.bf16 %v1010
    %v1065 = vunpack.c.l.bf16 %v1011
    %v1066 = vunpack.c.h.bf16 %v1011
    %v1067 = vunpack.c.l.bf16 %v1012
    %v1068 = vunpack.c.h.bf16 %v1012
    %v1069 = vunpack.c.l.bf16 %v1013
    %v1070 = vunpack.c.h.bf16 %v1013
    %v1071 = vunpack.c.l.bf16 %v1014
    %v1072 = vunpack.c.h.bf16 %v1014
    %v1073 = vunpack.c.l.bf16 %v1015
    %v1074 = vunpack.c.h.bf16 %v1015
    %v1075 = vunpack.c.l.bf16 %v1016
    %v1076 = vunpack.c.h.bf16 %v1016
    %v1077 = vunpack.c.l.bf16 %v1017
    %v1078 = vunpack.c.h.bf16 %v1017
    %v1079 = vunpack.c.l.bf16 %v1018
    %v1080 = vunpack.c.h.bf16 %v1018
    %v1081 = vunpack.c.l.bf16 %v1019
    %v1082 = vunpack.c.h.bf16 %v1019
    %v1083 = vunpack.c.l.bf16 %v1020
    %v1084 = vunpack.c.h.bf16 %v1020
    %v1085 = vunpack.c.l.bf16 %v1021
    %v1086 = vunpack.c.h.bf16 %v1021
    %v1087 = vunpack.c.l.bf16 %v1022
    %v1088 = vunpack.c.h.bf16 %v1022
    %v1089 = vunpack.c.l.bf16 %v1023
    %v1090 = vunpack.c.h.bf16 %v1023
    %v1091 = vunpack.c.l.bf16 %v1024
    %v1092 = vunpack.c.h.bf16 %v1024
    %v1093 = vunpack.c.l.bf16 %v1025
    %v1094 = vunpack.c.h.bf16 %v1025
    %v1095 = vunpack.c.l.bf16 %v1026
    %v1096 = vunpack.c.h.bf16 %v1026
    %v1097 = vunpack.c.l.bf16 %v1027
    %v1098 = vunpack.c.h.bf16 %v1027
    %v1099 = vunpack.c.l.bf16 %v1028
    %v1100 = vunpack.c.h.bf16 %v1028
    %v1101 = vunpack.c.l.bf16 %v1029
    %v1102 = vunpack.c.h.bf16 %v1029
    %v1103 = vunpack.c.l.bf16 %v1030
    %v1104 = vunpack.c.h.bf16 %v1030
    %v1105 = vunpack.c.l.bf16 %v1031
    %v1106 = vunpack.c.h.bf16 %v1031
    %v1107 = vunpack.c.l.bf16 %v1032
    %v1108 = vunpack.c.h.bf16 %v1032
    %v1109 = vunpack.c.l.bf16 %v1033
    %v1110 = vunpack.c.h.bf16 %v1033
    %v1111 = vunpack.c.l.bf16 %v1034
    %v1112 = vunpack.c.h.bf16 %v1034
    %v1113 = vunpack.c.l.bf16 %v1035
    %v1114 = vunpack.c.h.bf16 %v1035
    %v1115 = vunpack.c.l.bf16 %v1036
    %v1116 = vunpack.c.h.bf16 %v1036
    %v1117 = vunpack.c.l.bf16 %v1037
    %v1118 = vunpack.c.h.bf16 %v1037
    %v1119 = vunpack.c.l.bf16 %v1038
    %v1120 = vunpack.c.h.bf16 %v1038
    %v1121 = vunpack.c.l.bf16 %v1039
    %v1122 = vunpack.c.h.bf16 %v1039
    %v1123 = vunpack.c.l.bf16 %v1040
    %v1124 = vunpack.c.h.bf16 %v1040
    %v1125 = vunpack.c.l.bf16 %v1041
    %v1126 = vunpack.c.h.bf16 %v1041
    %v1127 = vunpack.c.l.bf16 %v1042
    %v1128 = vunpack.c.h.bf16 %v1042
    %v1129 = vunpack.c.l.bf16 %v1043
    %v1130 = vunpack.c.h.bf16 %v1043
    %v1131 = vunpack.c.l.bf16 %v1044
    %v1132 = vunpack.c.h.bf16 %v1044
    %v1133 = vunpack.c.l.bf16 %v1045
    %v1134 = vunpack.c.h.bf16 %v1045
    %v1135 = vunpack.c.l.bf16 %v1046
    %v1136 = vunpack.c.h.bf16 %v1046
    %v1137 = vunpack.c.l.bf16 %v1047
    %v1138 = vunpack.c.h.bf16 %v1047
    %v1139 = vunpack.c.l.bf16 %v1048
    %v1140 = vunpack.c.h.bf16 %v1048
    %v1141 = vunpack.c.l.bf16 %v1049
    %v1142 = vunpack.c.h.bf16 %v1049
    %v1143 = vunpack.c.l.bf16 %v1050
    %v1144 = vunpack.c.h.bf16 %v1050
    %v1145 = vunpack.c.l.bf16 %v1051
    %v1146 = vunpack.c.h.bf16 %v1051
    %v1147 = vunpack.c.l.bf16 %v1052
    %v1148 = vunpack.c.h.bf16 %v1052
    %v1149 = vld [vmem:[%s6] sm:$0x3f]
    %v1151 = vperm.slane %v1149, 0
    %v1152 = vperm.slane %v1149, 1
    %v1153 = vperm.slane %v1149, 2
    %v1154 = vperm.slane %v1149, 3
    %v1155 = vperm.slane %v1149, 4
    %v1156 = vperm.slane %v1149, 5
    %1163 = vmatpush.msra.mxu0 %v1143
    %1164 = vmatpush.msra.mxu0 %v1137
    %1165 = vmatpush.msra.mxu0 %v1131
    %1166 = vmatpush.msra.mxu0 %v1125
    %1167 = vmatpush.msra.mxu0 %v1119
    %1168 = vmatpush.msra.mxu0 %v1113
    %1169 = vmatpush.msra.mxu0 %v1107
    %1170 = vmatpush.msra.mxu0 %v1101
    %1171 = vmatpush.msra.mxu0 %v1095
    %1172 = vmatpush.msra.mxu0 %v1089
    %1173 = vmatpush.msra.mxu0 %v1083
    %1174 = vmatpush.msra.mxu0 %v1077
    %1175 = vmatpush.msra.mxu0 %v1071
    %1176 = vmatpush.msra.mxu0 %v1065
    %1177 = vmatpush.msra.mxu0 %v1059
    %1178 = vmatpush.msra.mxu0 %v1053
    %1179 = vmatmul.f32.gmra.mxu0 %v1001
    %v1180 = vpop.f32.mrf.mxu0
    %v1181 = vadd.f32 %v1151, %v1180
    %1182 = vmatmul.f32.gmra.mxu0 %v1002
    %v1183 = vpop.f32.mrf.mxu0
    %v1184 = vadd.f32 %v1151, %v1183
    %1185 = vmatmul.f32.gmra.mxu0 %v1003
    %v1186 = vpop.f32.mrf.mxu0
    %v1187 = vadd.f32 %v1151, %v1186
    %1188 = vmatmul.f32.gmra.mxu0 %v1004
    %v1189 = vpop.f32.mrf.mxu0
    %v1190 = vadd.f32 %v1151, %v1189
    %1191 = vdwg.mxu0
    %1192 = vmatpush.msra.mxu0 %v1144
    %1193 = vmatpush.msra.mxu0 %v1138
    %1194 = vmatpush.msra.mxu0 %v1132
    %1195 = vmatpush.msra.mxu0 %v1126
    %1196 = vmatpush.msra.mxu0 %v1120
    %1197 = vmatpush.msra.mxu0 %v1114
    %1198 = vmatpush.msra.mxu0 %v1108
    %1199 = vmatpush.msra.mxu0 %v1102
    %1200 = vmatpush.msra.mxu0 %v1096
    %1201 = vmatpush.msra.mxu0 %v1090
    %1202 = vmatpush.msra.mxu0 %v1084
    %1203 = vmatpush.msra.mxu0 %v1078
    %1204 = vmatpush.msra.mxu0 %v1072
    %1205 = vmatpush.msra.mxu0 %v1066
    %1206 = vmatpush.msra.mxu0 %v1060
    %1207 = vmatpush.msra.mxu0 %v1054
    %1208 = vmatmul.f32.gmra.mxu0 %v1001
    %v1209 = vpop.f32.mrf.mxu0
    %v1210 = vadd.f32 %v1152, %v1209
    %1211 = vmatmul.f32.gmra.mxu0 %v1002
    %v1212 = vpop.f32.mrf.mxu0
    %v1213 = vadd.f32 %v1152, %v1212
    %1214 = vmatmul.f32.gmra.mxu0 %v1003
    %v1215 = vpop.f32.mrf.mxu0
    %v1216 = vadd.f32 %v1152, %v1215
    %1217 = vmatmul.f32.gmra.mxu0 %v1004
    %v1218 = vpop.f32.mrf.mxu0
    %v1219 = vadd.f32 %v1152, %v1218
    %1220 = vdwg.mxu0
    %1221 = vmatpush.msra.mxu0 %v1145
    %1222 = vmatpush.msra.mxu0 %v1139
    %1223 = vmatpush.msra.mxu0 %v1133
    %1224 = vmatpush.msra.mxu0 %v1127
    %1225 = vmatpush.msra.mxu0 %v1121
    %1226 = vmatpush.msra.mxu0 %v1115
    %1227 = vmatpush.msra.mxu0 %v1109
    %1228 = vmatpush.msra.mxu0 %v1103
    %1229 = vmatpush.msra.mxu0 %v1097
    %1230 = vmatpush.msra.mxu0 %v1091
    %1231 = vmatpush.msra.mxu0 %v1085
    %1232 = vmatpush.msra.mxu0 %v1079
    %1233 = vmatpush.msra.mxu0 %v1073
    %1234 = vmatpush.msra.mxu0 %v1067
    %1235 = vmatpush.msra.mxu0 %v1061
    %1236 = vmatpush.msra.mxu0 %v1055
    %1237 = vmatmul.f32.gmra.mxu0 %v1001
    %v1238 = vpop.f32.mrf.mxu0
    %v1239 = vadd.f32 %v1153, %v1238
    %1240 = vmatmul.f32.gmra.mxu0 %v1002
    %v1241 = vpop.f32.mrf.mxu0
    %v1242 = vadd.f32 %v1153, %v1241
    %1243 = vmatmul.f32.gmra.mxu0 %v1003
    %v1244 = vpop.f32.mrf.mxu0
    %v1245 = vadd.f32 %v1153, %v1244
    %1246 = vmatmul.f32.gmra.mxu0 %v1004
    %v1247 = vpop.f32.mrf.mxu0
    %v1248 = vadd.f32 %v1153, %v1247
    %1249 = vdwg.mxu0
    %1250 = vmatpush.msra.mxu0 %v1146
    %1251 = vmatpush.msra.mxu0 %v1140
    %1252 = vmatpush.msra.mxu0 %v1134
    %1253 = vmatpush.msra.mxu0 %v1128
    %1254 = vmatpush.msra.mxu0 %v1122
    %1255 = vmatpush.msra.mxu0 %v1116
    %1256 = vmatpush.msra.mxu0 %v1110
    %1257 = vmatpush.msra.mxu0 %v1104
    %1258 = vmatpush.msra.mxu0 %v1098
    %1259 = vmatpush.msra.mxu0 %v1092
    %1260 = vmatpush.msra.mxu0 %v1086
    %1261 = vmatpush.msra.mxu0 %v1080
    %1262 = vmatpush.msra.mxu0 %v1074
    %1263 = vmatpush.msra.mxu0 %v1068
    %1264 = vmatpush.msra.mxu0 %v1062
    %1265 = vmatpush.msra.mxu0 %v1056
    %1266 = vmatmul.f32.gmra.mxu0 %v1001
    %v1267 = vpop.f32.mrf.mxu0
    %v1268 = vadd.f32 %v1154, %v1267
    %1269 = vmatmul.f32.gmra.mxu0 %v1002
    %v1270 = vpop.f32.mrf.mxu0
    %v1271 = vadd.f32 %v1154, %v1270
    %1272 = vmatmul.f32.gmra.mxu0 %v1003
    %v1273 = vpop.f32.mrf.mxu0
    %v1274 = vadd.f32 %v1154, %v1273
    %1275 = vmatmul.f32.gmra.mxu0 %v1004
    %v1276 = vpop.f32.mrf.mxu0
    %v1277 = vadd.f32 %v1154, %v1276
    %1278 = vdwg.mxu0
    %1279 = vmatpush.msra.mxu0 %v1147
    %1280 = vmatpush.msra.mxu0 %v1141
    %1281 = vmatpush.msra.mxu0 %v1135
    %1282 = vmatpush.msra.mxu0 %v1129
    %1283 = vmatpush.msra.mxu0 %v1123
    %1284 = vmatpush.msra.mxu0 %v1117
    %1285 = vmatpush.msra.mxu0 %v1111
    %1286 = vmatpush.msra.mxu0 %v1105
    %1287 = vmatpush.msra.mxu0 %v1099
    %1288 = vmatpush.msra.mxu0 %v1093
    %1289 = vmatpush.msra.mxu0 %v1087
    %1290 = vmatpush.msra.mxu0 %v1081
    %1291 = vmatpush.msra.mxu0 %v1075
    %1292 = vmatpush.msra.mxu0 %v1069
    %1293 = vmatpush.msra.mxu0 %v1063
    %1294 = vmatpush.msra.mxu0 %v1057
    %1295 = vmatmul.f32.gmra.mxu0 %v1001
    %v1296 = vpop.f32.mrf.mxu0
    %v1297 = vadd.f32 %v1155, %v1296
    %1298 = vmatmul.f32.gmra.mxu0 %v1002
    %v1299 = vpop.f32.mrf.mxu0
    %v1300 = vadd.f32 %v1155, %v1299
    %1301 = vmatmul.f32.gmra.mxu0 %v1003
    %v1302 = vpop.f32.mrf.mxu0
    %v1303 = vadd.f32 %v1155, %v1302
    %1304 = vmatmul.f32.gmra.mxu0 %v1004
    %v1305 = vpop.f32.mrf.mxu0
    %v1306 = vadd.f32 %v1155, %v1305
    %1307 = vdwg.mxu0
    %1308 = vmatpush.msra.mxu0 %v1148
    %1309 = vmatpush.msra.mxu0 %v1142
    %1310 = vmatpush.msra.mxu0 %v1136
    %1311 = vmatpush.msra.mxu0 %v1130
    %1312 = vmatpush.msra.mxu0 %v1124
    %1313 = vmatpush.msra.mxu0 %v1118
    %1314 = vmatpush.msra.mxu0 %v1112
    %1315 = vmatpush.msra.mxu0 %v1106
    %1316 = vmatpush.msra.mxu0 %v1100
    %1317 = vmatpush.msra.mxu0 %v1094
    %1318 = vmatpush.msra.mxu0 %v1088
    %1319 = vmatpush.msra.mxu0 %v1082
    %1320 = vmatpush.msra.mxu0 %v1076
    %1321 = vmatpush.msra.mxu0 %v1070
    %1322 = vmatpush.msra.mxu0 %v1064
    %1323 = vmatpush.msra.mxu0 %v1058
    %1324 = vmatmul.f32.gmra.mxu0 %v1001
    %v1325 = vpop.f32.mrf.mxu0
    %v1326 = vadd.f32 %v1156, %v1325
    %1327 = vmatmul.f32.gmra.mxu0 %v1002
    %v1328 = vpop.f32.mrf.mxu0
    %v1329 = vadd.f32 %v1156, %v1328
    %1330 = vmatmul.f32.gmra.mxu0 %v1003
    %v1331 = vpop.f32.mrf.mxu0
    %v1332 = vadd.f32 %v1156, %v1331
    %1333 = vmatmul.f32.gmra.mxu0 %v1004
    %v1334 = vpop.f32.mrf.mxu0
    %v1335 = vadd.f32 %v1156, %v1334
    %1336 = vdwg.mxu0
    %v1337 = vmax.f32 %v1181, 0.0
    %v1338 = vmax.f32 %v1210, 0.0
    %v1339 = vmax.f32 %v1239, 0.0
    %v1340 = vmax.f32 %v1268, 0.0
    %v1341 = vmax.f32 %v1297, 0.0
    %v1342 = vmax.f32 %v1326, 0.0
    %v1343 = vmax.f32 %v1184, 0.0
    %v1344 = vmax.f32 %v1213, 0.0
    %v1345 = vmax.f32 %v1242, 0.0
    %v1346 = vmax.f32 %v1271, 0.0
    %v1347 = vmax.f32 %v1300, 0.0
    %v1348 = vmax.f32 %v1329, 0.0
    %v1349 = vmax.f32 %v1187, 0.0
    %v1350 = vmax.f32 %v1216, 0.0
    %v1351 = vmax.f32 %v1245, 0.0
    %v1352 = vmax.f32 %v1274, 0.0
    %v1353 = vmax.f32 %v1303, 0.0
    %v1354 = vmax.f32 %v1332, 0.0
    %v1355 = vmax.f32 %v1190, 0.0
    %v1356 = vmax.f32 %v1219, 0.0
    %v1357 = vmax.f32 %v1248, 0.0
    %v1358 = vmax.f32 %v1277, 0.0
    %v1359 = vmax.f32 %v1306, 0.0
    %v1360 = vmax.f32 %v1335, 0.0
    %v1361 = vadd.s32 %v688, 8
    %vm1362 = vcmp.lt.s32.totalorder %v688, 14
    %vm1363 = vcmp.lt.s32.totalorder %v1361, 14
    %v1364 = vsel %vm1362, %v1337, -inf
    %v1365 = vsel %vm1362, %v1338, -inf
    %v1366 = vsel %vm1362, %v1339, -inf
    %v1367 = vsel %vm1362, %v1340, -inf
    %v1368 = vsel %vm1362, %v1341, -inf
    %v1369 = vsel %vm1362, %v1342, -inf
    %v1370 = vsel %vm1363, %v1343, -inf
    %v1371 = vsel %vm1363, %v1344, -inf
    %v1372 = vsel %vm1363, %v1345, -inf
    %v1373 = vsel %vm1363, %v1346, -inf
    %v1374 = vsel %vm1363, %v1347, -inf
    %v1375 = vsel %vm1363, %v1348, -inf
    %v1376 = vmax.f32 %v1364, %v1370
    %v1377 = vrot.slane %v1376, 4
    %v1378 = vmax.f32 %v1376, %v1377
    %v1379 = vrot.slane %v1378, 2
    %v1380 = vmax.f32 %v1378, %v1379
    %v1381 = vrot.slane %v1380, 1
    %v1382 = vmax.f32 %v1380, %v1381
    %v1383 = vmax.f32 %v1365, %v1371
    %v1384 = vrot.slane %v1383, 4
    %v1385 = vmax.f32 %v1383, %v1384
    %v1386 = vrot.slane %v1385, 2
    %v1387 = vmax.f32 %v1385, %v1386
    %v1388 = vrot.slane %v1387, 1
    %v1389 = vmax.f32 %v1387, %v1388
    %v1390 = vmax.f32 %v1366, %v1372
    %v1391 = vrot.slane %v1390, 4
    %v1392 = vmax.f32 %v1390, %v1391
    %v1393 = vrot.slane %v1392, 2
    %v1394 = vmax.f32 %v1392, %v1393
    %v1395 = vrot.slane %v1394, 1
    %v1396 = vmax.f32 %v1394, %v1395
    %v1397 = vmax.f32 %v1367, %v1373
    %v1398 = vrot.slane %v1397, 4
    %v1399 = vmax.f32 %v1397, %v1398
    %v1400 = vrot.slane %v1399, 2
    %v1401 = vmax.f32 %v1399, %v1400
    %v1402 = vrot.slane %v1401, 1
    %v1403 = vmax.f32 %v1401, %v1402
    %v1404 = vmax.f32 %v1368, %v1374
    %v1405 = vrot.slane %v1404, 4
    %v1406 = vmax.f32 %v1404, %v1405
    %v1407 = vrot.slane %v1406, 2
    %v1408 = vmax.f32 %v1406, %v1407
    %v1409 = vrot.slane %v1408, 1
    %v1410 = vmax.f32 %v1408, %v1409
    %v1411 = vmax.f32 %v1369, %v1375
    %v1412 = vrot.slane %v1411, 4
    %v1413 = vmax.f32 %v1411, %v1412
    %v1414 = vrot.slane %v1413, 2
    %v1415 = vmax.f32 %v1413, %v1414
    %v1416 = vrot.slane %v1415, 1
    %v1417 = vmax.f32 %v1415, %v1416
    %v1418 = vsel %vm1362, %v1349, -inf
    %v1419 = vsel %vm1362, %v1350, -inf
    %v1420 = vsel %vm1362, %v1351, -inf
    %v1421 = vsel %vm1362, %v1352, -inf
    %v1422 = vsel %vm1362, %v1353, -inf
    %v1423 = vsel %vm1362, %v1354, -inf
    %v1424 = vsel %vm1363, %v1355, -inf
    %v1425 = vsel %vm1363, %v1356, -inf
    %v1426 = vsel %vm1363, %v1357, -inf
    %v1427 = vsel %vm1363, %v1358, -inf
    %v1428 = vsel %vm1363, %v1359, -inf
    %v1429 = vsel %vm1363, %v1360, -inf
    %v1430 = vmax.f32 %v1418, %v1424
    %v1431 = vrot.slane %v1430, 4
    %v1432 = vmax.f32 %v1430, %v1431
    %v1433 = vrot.slane %v1432, 2
    %v1434 = vmax.f32 %v1432, %v1433
    %v1435 = vrot.slane %v1434, 1
    %v1436 = vmax.f32 %v1434, %v1435
    %v1437 = vmax.f32 %v1419, %v1425
    %v1438 = vrot.slane %v1437, 4
    %v1439 = vmax.f32 %v1437, %v1438
    %v1440 = vrot.slane %v1439, 2
    %v1441 = vmax.f32 %v1439, %v1440
    %v1442 = vrot.slane %v1441, 1
    %v1443 = vmax.f32 %v1441, %v1442
    %v1444 = vmax.f32 %v1420, %v1426
    %v1445 = vrot.slane %v1444, 4
    %v1446 = vmax.f32 %v1444, %v1445
    %v1447 = vrot.slane %v1446, 2
    %v1448 = vmax.f32 %v1446, %v1447
    %v1449 = vrot.slane %v1448, 1
    %v1450 = vmax.f32 %v1448, %v1449
    %v1451 = vmax.f32 %v1421, %v1427
    %v1452 = vrot.slane %v1451, 4
    %v1453 = vmax.f32 %v1451, %v1452
    %v1454 = vrot.slane %v1453, 2
    %v1455 = vmax.f32 %v1453, %v1454
    %v1456 = vrot.slane %v1455, 1
    %v1457 = vmax.f32 %v1455, %v1456
    %v1458 = vmax.f32 %v1422, %v1428
    %v1459 = vrot.slane %v1458, 4
    %v1460 = vmax.f32 %v1458, %v1459
    %v1461 = vrot.slane %v1460, 2
    %v1462 = vmax.f32 %v1460, %v1461
    %v1463 = vrot.slane %v1462, 1
    %v1464 = vmax.f32 %v1462, %v1463
    %v1465 = vmax.f32 %v1423, %v1429
    %v1466 = vrot.slane %v1465, 4
    %v1467 = vmax.f32 %v1465, %v1466
    %v1468 = vrot.slane %v1467, 2
    %v1469 = vmax.f32 %v1467, %v1468
    %v1470 = vrot.slane %v1469, 1
    %v1471 = vmax.f32 %v1469, %v1470
    %vm1472 = vcmask 1040384
    %v1473 = vsel %vm1472, %v1382, %v1436
    %v1474 = vsel %vm1472, %v1389, %v1443
    %v1475 = vsel %vm1472, %v1396, %v1450
    %v1476 = vsel %vm1472, %v1403, %v1457
    %v1477 = vsel %vm1472, %v1410, %v1464
    %v1478 = vsel %vm1472, %v1417, %v1471
    %v1479 = vld [vmem:[#allocation3] sm:$0xff]
    %v1480 = vld [vmem:[#allocation3 + $0x8] sm:$0xff]
    %v1481 = vld [vmem:[#allocation3 + $0x10] sm:$0xff]
    %v1482 = vld [vmem:[#allocation3 + $0x18] sm:$0xff]
    %v1483 = vld [vmem:[#allocation3 + $0x20] sm:$0xff]
    %v1484 = vld [vmem:[#allocation3 + $0x28] sm:$0xff]
    %v1485 = vld [vmem:[#allocation3 + $0x30] sm:$0xff]
    %v1486 = vld [vmem:[#allocation3 + $0x38] sm:$0xff]
    %v1487 = vld [vmem:[#allocation3 + $0x40] sm:$0xff]
    %v1488 = vld [vmem:[#allocation3 + $0x48] sm:$0xff]
    %v1489 = vld [vmem:[#allocation3 + $0x50] sm:$0xff]
    %v1490 = vld [vmem:[#allocation3 + $0x58] sm:$0xff]
    %v1491 = vld [vmem:[#allocation3 + $0x60] sm:$0xff]
    %v1492 = vld [vmem:[#allocation3 + $0x68] sm:$0xff]
    %v1493 = vld [vmem:[#allocation3 + $0x70] sm:$0xff]
    %v1494 = vld [vmem:[#allocation3 + $0x78] sm:$0xff]
    %v1495 = vld [vmem:[#allocation3 + $0x80] sm:$0xff]
    %v1496 = vld [vmem:[#allocation3 + $0x88] sm:$0xff]
    %v1497 = vld [vmem:[#allocation3 + $0x90] sm:$0xff]
    %v1498 = vld [vmem:[#allocation3 + $0x98] sm:$0xff]
    %v1499 = vld [vmem:[#allocation3 + $0xa0] sm:$0xff]
    %v1500 = vld [vmem:[#allocation3 + $0xa8] sm:$0xff]
    %v1501 = vld [vmem:[#allocation3 + $0xb0] sm:$0xff]
    %v1502 = vld [vmem:[#allocation3 + $0xb8] sm:$0xff]
    %v1503 = vld [vmem:[#allocation3 + $0xc0] sm:$0xff]
    %v1504 = vld [vmem:[#allocation3 + $0xc8] sm:$0xff]
    %v1505 = vld [vmem:[#allocation3 + $0xd0] sm:$0xff]
    %v1506 = vld [vmem:[#allocation3 + $0xd8] sm:$0xff]
    %v1507 = vld [vmem:[#allocation3 + $0xe0] sm:$0xff]
    %v1508 = vld [vmem:[#allocation3 + $0xe8] sm:$0xff]
    %v1509 = vld [vmem:[#allocation3 + $0xf0] sm:$0xff]
    %v1510 = vld [vmem:[#allocation3 + $0xf8] sm:$0xff]
    %v1511 = vld [vmem:[#allocation3 + $0x100] sm:$0xff]
    %v1512 = vld [vmem:[#allocation3 + $0x108] sm:$0xff]
    %v1513 = vld [vmem:[#allocation3 + $0x110] sm:$0xff]
    %v1514 = vld [vmem:[#allocation3 + $0x118] sm:$0xff]
    %v1515 = vld [vmem:[#allocation3 + $0x120] sm:$0xff]
    %v1516 = vld [vmem:[#allocation3 + $0x128] sm:$0xff]
    %v1517 = vld [vmem:[#allocation3 + $0x130] sm:$0xff]
    %v1518 = vld [vmem:[#allocation3 + $0x138] sm:$0xff]
    %v1519 = vld [vmem:[#allocation3 + $0x140] sm:$0xff]
    %v1520 = vld [vmem:[#allocation3 + $0x148] sm:$0xff]
    %v1521 = vld [vmem:[#allocation3 + $0x150] sm:$0xff]
    %v1522 = vld [vmem:[#allocation3 + $0x158] sm:$0xff]
    %v1523 = vld [vmem:[#allocation3 + $0x160] sm:$0xff]
    %v1524 = vld [vmem:[#allocation3 + $0x168] sm:$0xff]
    %v1525 = vld [vmem:[#allocation3 + $0x170] sm:$0xff]
    %v1526 = vld [vmem:[#allocation3 + $0x178] sm:$0xff]
    %v1527 = vld [vmem:[#allocation3 + $0x180] sm:$0xff]
    %v1528 = vld [vmem:[#allocation3 + $0x188] sm:$0xff]
    %v1529 = vld [vmem:[#allocation3 + $0x190] sm:$0xff]
    %v1530 = vld [vmem:[#allocation3 + $0x198] sm:$0xff]
    %v1531 = vld [vmem:[#allocation3 + $0x1a0] sm:$0xff]
    %v1532 = vld [vmem:[#allocation3 + $0x1a8] sm:$0xff]
    %v1533 = vld [vmem:[#allocation3 + $0x1b0] sm:$0xff]
    %v1534 = vld [vmem:[#allocation3 + $0x1b8] sm:$0xff]
    %v1535 = vld [vmem:[#allocation3 + $0x1c0] sm:$0xff]
    %v1536 = vld [vmem:[#allocation3 + $0x1c8] sm:$0xff]
    %v1537 = vld [vmem:[#allocation3 + $0x1d0] sm:$0xff]
    %v1538 = vld [vmem:[#allocation3 + $0x1d8] sm:$0xff]
    %v1539 = vld [vmem:[#allocation3 + $0x1e0] sm:$0xff]
    %v1540 = vld [vmem:[#allocation3 + $0x1e8] sm:$0xff]
    %v1541 = vld [vmem:[#allocation3 + $0x1f0] sm:$0xff]
    %v1542 = vld [vmem:[#allocation3 + $0x1f8] sm:$0xff]
    %v1543 = vld [vmem:[#allocation3 + $0x200] sm:$0xff]
    %v1544 = vld [vmem:[#allocation3 + $0x208] sm:$0xff]
    %v1545 = vld [vmem:[#allocation3 + $0x210] sm:$0xff]
    %v1546 = vld [vmem:[#allocation3 + $0x218] sm:$0xff]
    %v1547 = vld [vmem:[#allocation3 + $0x220] sm:$0xff]
    %v1548 = vld [vmem:[#allocation3 + $0x228] sm:$0xff]
    %v1549 = vld [vmem:[#allocation3 + $0x230] sm:$0xff]
    %v1550 = vld [vmem:[#allocation3 + $0x238] sm:$0xff]
    %v1551 = vld [vmem:[#allocation3 + $0x240] sm:$0xff]
    %v1552 = vld [vmem:[#allocation3 + $0x248] sm:$0xff]
    %v1553 = vld [vmem:[#allocation3 + $0x250] sm:$0xff]
    %v1554 = vld [vmem:[#allocation3 + $0x258] sm:$0xff]
    %v1555 = vld [vmem:[#allocation3 + $0x260] sm:$0xff]
    %v1556 = vld [vmem:[#allocation3 + $0x268] sm:$0xff]
    %v1557 = vld [vmem:[#allocation3 + $0x270] sm:$0xff]
    %v1558 = vld [vmem:[#allocation3 + $0x278] sm:$0xff]
    %v1559 = vld [vmem:[#allocation3 + $0x280] sm:$0xff]
    %v1560 = vld [vmem:[#allocation3 + $0x288] sm:$0xff]
    %v1561 = vld [vmem:[#allocation3 + $0x290] sm:$0xff]
    %v1562 = vld [vmem:[#allocation3 + $0x298] sm:$0xff]
    %v1563 = vld [vmem:[#allocation3 + $0x2a0] sm:$0xff]
    %v1564 = vld [vmem:[#allocation3 + $0x2a8] sm:$0xff]
    %v1565 = vld [vmem:[#allocation3 + $0x2b0] sm:$0xff]
    %v1566 = vld [vmem:[#allocation3 + $0x2b8] sm:$0xff]
    %v1567 = vld [vmem:[#allocation3 + $0x2c0] sm:$0xff]
    %v1568 = vld [vmem:[#allocation3 + $0x2c8] sm:$0xff]
    %v1569 = vld [vmem:[#allocation3 + $0x2d0] sm:$0xff]
    %v1570 = vld [vmem:[#allocation3 + $0x2d8] sm:$0xff]
    %v1571 = vld [vmem:[#allocation3 + $0x2e0] sm:$0xff]
    %v1572 = vld [vmem:[#allocation3 + $0x2e8] sm:$0xff]
    %v1573 = vld [vmem:[#allocation3 + $0x2f0] sm:$0xff]
    %v1574 = vld [vmem:[#allocation3 + $0x2f8] sm:$0xff]
    %v1575 = vunpack.c.l.bf16 %v1479
    %v1576 = vunpack.c.h.bf16 %v1479
    %v1577 = vunpack.c.l.bf16 %v1480
    %v1578 = vunpack.c.h.bf16 %v1480
    %v1579 = vunpack.c.l.bf16 %v1481
    %v1580 = vunpack.c.h.bf16 %v1481
    %v1581 = vunpack.c.l.bf16 %v1482
    %v1582 = vunpack.c.h.bf16 %v1482
    %v1583 = vunpack.c.l.bf16 %v1483
    %v1584 = vunpack.c.h.bf16 %v1483
    %v1585 = vunpack.c.l.bf16 %v1484
    %v1586 = vunpack.c.h.bf16 %v1484
    %v1587 = vunpack.c.l.bf16 %v1485
    %v1588 = vunpack.c.h.bf16 %v1485
    %v1589 = vunpack.c.l.bf16 %v1486
    %v1590 = vunpack.c.h.bf16 %v1486
    %v1591 = vunpack.c.l.bf16 %v1487
    %v1592 = vunpack.c.h.bf16 %v1487
    %v1593 = vunpack.c.l.bf16 %v1488
    %v1594 = vunpack.c.h.bf16 %v1488
    %v1595 = vunpack.c.l.bf16 %v1489
    %v1596 = vunpack.c.h.bf16 %v1489
    %v1597 = vunpack.c.l.bf16 %v1490
    %v1598 = vunpack.c.h.bf16 %v1490
    %v1599 = vunpack.c.l.bf16 %v1491
    %v1600 = vunpack.c.h.bf16 %v1491
    %v1601 = vunpack.c.l.bf16 %v1492
    %v1602 = vunpack.c.h.bf16 %v1492
    %v1603 = vunpack.c.l.bf16 %v1493
    %v1604 = vunpack.c.h.bf16 %v1493
    %v1605 = vunpack.c.l.bf16 %v1494
    %v1606 = vunpack.c.h.bf16 %v1494
    %v1607 = vunpack.c.l.bf16 %v1495
    %v1608 = vunpack.c.h.bf16 %v1495
    %v1609 = vunpack.c.l.bf16 %v1496
    %v1610 = vunpack.c.h.bf16 %v1496
    %v1611 = vunpack.c.l.bf16 %v1497
    %v1612 = vunpack.c.h.bf16 %v1497
    %v1613 = vunpack.c.l.bf16 %v1498
    %v1614 = vunpack.c.h.bf16 %v1498
    %v1615 = vunpack.c.l.bf16 %v1499
    %v1616 = vunpack.c.h.bf16 %v1499
    %v1617 = vunpack.c.l.bf16 %v1500
    %v1618 = vunpack.c.h.bf16 %v1500
    %v1619 = vunpack.c.l.bf16 %v1501
    %v1620 = vunpack.c.h.bf16 %v1501
    %v1621 = vunpack.c.l.bf16 %v1502
    %v1622 = vunpack.c.h.bf16 %v1502
    %v1623 = vunpack.c.l.bf16 %v1503
    %v1624 = vunpack.c.h.bf16 %v1503
    %v1625 = vunpack.c.l.bf16 %v1504
    %v1626 = vunpack.c.h.bf16 %v1504
    %v1627 = vunpack.c.l.bf16 %v1505
    %v1628 = vunpack.c.h.bf16 %v1505
    %v1629 = vunpack.c.l.bf16 %v1506
    %v1630 = vunpack.c.h.bf16 %v1506
    %v1631 = vunpack.c.l.bf16 %v1507
    %v1632 = vunpack.c.h.bf16 %v1507
    %v1633 = vunpack.c.l.bf16 %v1508
    %v1634 = vunpack.c.h.bf16 %v1508
    %v1635 = vunpack.c.l.bf16 %v1509
    %v1636 = vunpack.c.h.bf16 %v1509
    %v1637 = vunpack.c.l.bf16 %v1510
    %v1638 = vunpack.c.h.bf16 %v1510
    %v1639 = vunpack.c.l.bf16 %v1511
    %v1640 = vunpack.c.h.bf16 %v1511
    %v1641 = vunpack.c.l.bf16 %v1512
    %v1642 = vunpack.c.h.bf16 %v1512
    %v1643 = vunpack.c.l.bf16 %v1513
    %v1644 = vunpack.c.h.bf16 %v1513
    %v1645 = vunpack.c.l.bf16 %v1514
    %v1646 = vunpack.c.h.bf16 %v1514
    %v1647 = vunpack.c.l.bf16 %v1515
    %v1648 = vunpack.c.h.bf16 %v1515
    %v1649 = vunpack.c.l.bf16 %v1516
    %v1650 = vunpack.c.h.bf16 %v1516
    %v1651 = vunpack.c.l.bf16 %v1517
    %v1652 = vunpack.c.h.bf16 %v1517
    %v1653 = vunpack.c.l.bf16 %v1518
    %v1654 = vunpack.c.h.bf16 %v1518
    %v1655 = vunpack.c.l.bf16 %v1519
    %v1656 = vunpack.c.h.bf16 %v1519
    %v1657 = vunpack.c.l.bf16 %v1520
    %v1658 = vunpack.c.h.bf16 %v1520
    %v1659 = vunpack.c.l.bf16 %v1521
    %v1660 = vunpack.c.h.bf16 %v1521
    %v1661 = vunpack.c.l.bf16 %v1522
    %v1662 = vunpack.c.h.bf16 %v1522
    %v1663 = vunpack.c.l.bf16 %v1523
    %v1664 = vunpack.c.h.bf16 %v1523
    %v1665 = vunpack.c.l.bf16 %v1524
    %v1666 = vunpack.c.h.bf16 %v1524
    %v1667 = vunpack.c.l.bf16 %v1525
    %v1668 = vunpack.c.h.bf16 %v1525
    %v1669 = vunpack.c.l.bf16 %v1526
    %v1670 = vunpack.c.h.bf16 %v1526
    %v1671 = vunpack.c.l.bf16 %v1527
    %v1672 = vunpack.c.h.bf16 %v1527
    %v1673 = vunpack.c.l.bf16 %v1528
    %v1674 = vunpack.c.h.bf16 %v1528
    %v1675 = vunpack.c.l.bf16 %v1529
    %v1676 = vunpack.c.h.bf16 %v1529
    %v1677 = vunpack.c.l.bf16 %v1530
    %v1678 = vunpack.c.h.bf16 %v1530
    %v1679 = vunpack.c.l.bf16 %v1531
    %v1680 = vunpack.c.h.bf16 %v1531
    %v1681 = vunpack.c.l.bf16 %v1532
    %v1682 = vunpack.c.h.bf16 %v1532
    %v1683 = vunpack.c.l.bf16 %v1533
    %v1684 = vunpack.c.h.bf16 %v1533
    %v1685 = vunpack.c.l.bf16 %v1534
    %v1686 = vunpack.c.h.bf16 %v1534
    %v1687 = vunpack.c.l.bf16 %v1535
    %v1688 = vunpack.c.h.bf16 %v1535
    %v1689 = vunpack.c.l.bf16 %v1536
    %v1690 = vunpack.c.h.bf16 %v1536
    %v1691 = vunpack.c.l.bf16 %v1537
    %v1692 = vunpack.c.h.bf16 %v1537
    %v1693 = vunpack.c.l.bf16 %v1538
    %v1694 = vunpack.c.h.bf16 %v1538
    %v1695 = vunpack.c.l.bf16 %v1539
    %v1696 = vunpack.c.h.bf16 %v1539
    %v1697 = vunpack.c.l.bf16 %v1540
    %v1698 = vunpack.c.h.bf16 %v1540
    %v1699 = vunpack.c.l.bf16 %v1541
    %v1700 = vunpack.c.h.bf16 %v1541
    %v1701 = vunpack.c.l.bf16 %v1542
    %v1702 = vunpack.c.h.bf16 %v1542
    %v1703 = vunpack.c.l.bf16 %v1543
    %v1704 = vunpack.c.h.bf16 %v1543
    %v1705 = vunpack.c.l.bf16 %v1544
    %v1706 = vunpack.c.h.bf16 %v1544
    %v1707 = vunpack.c.l.bf16 %v1545
    %v1708 = vunpack.c.h.bf16 %v1545
    %v1709 = vunpack.c.l.bf16 %v1546
    %v1710 = vunpack.c.h.bf16 %v1546
    %v1711 = vunpack.c.l.bf16 %v1547
    %v1712 = vunpack.c.h.bf16 %v1547
    %v1713 = vunpack.c.l.bf16 %v1548
    %v1714 = vunpack.c.h.bf16 %v1548
    %v1715 = vunpack.c.l.bf16 %v1549
    %v1716 = vunpack.c.h.bf16 %v1549
    %v1717 = vunpack.c.l.bf16 %v1550
    %v1718 = vunpack.c.h.bf16 %v1550
    %v1719 = vunpack.c.l.bf16 %v1551
    %v1720 = vunpack.c.h.bf16 %v1551
    %v1721 = vunpack.c.l.bf16 %v1552
    %v1722 = vunpack.c.h.bf16 %v1552
    %v1723 = vunpack.c.l.bf16 %v1553
    %v1724 = vunpack.c.h.bf16 %v1553
    %v1725 = vunpack.c.l.bf16 %v1554
    %v1726 = vunpack.c.h.bf16 %v1554
    %v1727 = vunpack.c.l.bf16 %v1555
    %v1728 = vunpack.c.h.bf16 %v1555
    %v1729 = vunpack.c.l.bf16 %v1556
    %v1730 = vunpack.c.h.bf16 %v1556
    %v1731 = vunpack.c.l.bf16 %v1557
    %v1732 = vunpack.c.h.bf16 %v1557
    %v1733 = vunpack.c.l.bf16 %v1558
    %v1734 = vunpack.c.h.bf16 %v1558
    %v1735 = vunpack.c.l.bf16 %v1559
    %v1736 = vunpack.c.h.bf16 %v1559
    %v1737 = vunpack.c.l.bf16 %v1560
    %v1738 = vunpack.c.h.bf16 %v1560
    %v1739 = vunpack.c.l.bf16 %v1561
    %v1740 = vunpack.c.h.bf16 %v1561
    %v1741 = vunpack.c.l.bf16 %v1562
    %v1742 = vunpack.c.h.bf16 %v1562
    %v1743 = vunpack.c.l.bf16 %v1563
    %v1744 = vunpack.c.h.bf16 %v1563
    %v1745 = vunpack.c.l.bf16 %v1564
    %v1746 = vunpack.c.h.bf16 %v1564
    %v1747 = vunpack.c.l.bf16 %v1565
    %v1748 = vunpack.c.h.bf16 %v1565
    %v1749 = vunpack.c.l.bf16 %v1566
    %v1750 = vunpack.c.h.bf16 %v1566
    %v1751 = vunpack.c.l.bf16 %v1567
    %v1752 = vunpack.c.h.bf16 %v1567
    %v1753 = vunpack.c.l.bf16 %v1568
    %v1754 = vunpack.c.h.bf16 %v1568
    %v1755 = vunpack.c.l.bf16 %v1569
    %v1756 = vunpack.c.h.bf16 %v1569
    %v1757 = vunpack.c.l.bf16 %v1570
    %v1758 = vunpack.c.h.bf16 %v1570
    %v1759 = vunpack.c.l.bf16 %v1571
    %v1760 = vunpack.c.h.bf16 %v1571
    %v1761 = vunpack.c.l.bf16 %v1572
    %v1762 = vunpack.c.h.bf16 %v1572
    %v1763 = vunpack.c.l.bf16 %v1573
    %v1764 = vunpack.c.h.bf16 %v1573
    %v1765 = vunpack.c.l.bf16 %v1574
    %v1766 = vunpack.c.h.bf16 %v1574
    %v1767 = vld [vmem:[%s1] sm:$0x3]
    %v1768 = vld [vmem:[%s1 + $0x2] sm:$0x3]
    %1771 = vst [vmem:[#allocation1] ss:$9 sm:$0xff] %v1767
    %s1772 = scalar_lea.vmem [#allocation1], 1
    %1773 = vst [vmem:[%s1772] ss:$9 sm:$0xff] %v1768
    %v1774 = vld [vmem:[#allocation1] sm:$0xff]
    %v1775 = vld [vmem:[#allocation1 + $0x9] sm:$0xff]
    %1778 = vmatpush.msra.mxu0 %v1605
    %1779 = vmatpush.msra.mxu0 %v1603
    %1780 = vmatpush.msra.mxu0 %v1601
    %1781 = vmatpush.msra.mxu0 %v1599
    %1782 = vmatpush.msra.mxu0 %v1597
    %1783 = vmatpush.msra.mxu0 %v1595
    %1784 = vmatpush.msra.mxu0 %v1593
    %1785 = vmatpush.msra.mxu0 %v1591
    %1786 = vmatpush.msra.mxu0 %v1589
    %1787 = vmatpush.msra.mxu0 %v1587
    %1788 = vmatpush.msra.mxu0 %v1585
    %1789 = vmatpush.msra.mxu0 %v1583
    %1790 = vmatpush.msra.mxu0 %v1581
    %1791 = vmatpush.msra.mxu0 %v1579
    %1792 = vmatpush.msra.mxu0 %v1577
    %1793 = vmatpush.msra.mxu0 %v1575
    %1794 = vmatmul.f32.gmra.mxu0 %v1473
    %v1795 = vpop.f32.mrf.mxu0
    %v1796 = vadd.f32 %v1774, %v1795
    %1797 = vdwg.mxu0
    %1798 = vmatpush.msra.mxu0 %v1637
    %1799 = vmatpush.msra.mxu0 %v1635
    %1800 = vmatpush.msra.mxu0 %v1633
    %1801 = vmatpush.msra.mxu0 %v1631
    %1802 = vmatpush.msra.mxu0 %v1629
    %1803 = vmatpush.msra.mxu0 %v1627
    %1804 = vmatpush.msra.mxu0 %v1625
    %1805 = vmatpush.msra.mxu0 %v1623
    %1806 = vmatpush.msra.mxu0 %v1621
    %1807 = vmatpush.msra.mxu0 %v1619
    %1808 = vmatpush.msra.mxu0 %v1617
    %1809 = vmatpush.msra.mxu0 %v1615
    %1810 = vmatpush.msra.mxu0 %v1613
    %1811 = vmatpush.msra.mxu0 %v1611
    %1812 = vmatpush.msra.mxu0 %v1609
    %1813 = vmatpush.msra.mxu0 %v1607
    %1814 = vmatmul.f32.gmra.mxu0 %v1474
    %v1815 = vpop.f32.mrf.mxu0
    %v1816 = vadd.f32 %v1796, %v1815
    %1817 = vdwg.mxu0
    %1818 = vmatpush.msra.mxu0 %v1669
    %1819 = vmatpush.msra.mxu0 %v1667
    %1820 = vmatpush.msra.mxu0 %v1665
    %1821 = vmatpush.msra.mxu0 %v1663
    %1822 = vmatpush.msra.mxu0 %v1661
    %1823 = vmatpush.msra.mxu0 %v1659
    %1824 = vmatpush.msra.mxu0 %v1657
    %1825 = vmatpush.msra.mxu0 %v1655
    %1826 = vmatpush.msra.mxu0 %v1653
    %1827 = vmatpush.msra.mxu0 %v1651
    %1828 = vmatpush.msra.mxu0 %v1649
    %1829 = vmatpush.msra.mxu0 %v1647
    %1830 = vmatpush.msra.mxu0 %v1645
    %1831 = vmatpush.msra.mxu0 %v1643
    %1832 = vmatpush.msra.mxu0 %v1641
    %1833 = vmatpush.msra.mxu0 %v1639
    %1834 = vmatmul.f32.gmra.mxu0 %v1475
    %v1835 = vpop.f32.mrf.mxu0
    %v1836 = vadd.f32 %v1816, %v1835
    %1837 = vdwg.mxu0
    %1838 = vmatpush.msra.mxu0 %v1701
    %1839 = vmatpush.msra.mxu0 %v1699
    %1840 = vmatpush.msra.mxu0 %v1697
    %1841 = vmatpush.msra.mxu0 %v1695
    %1842 = vmatpush.msra.mxu0 %v1693
    %1843 = vmatpush.msra.mxu0 %v1691
    %1844 = vmatpush.msra.mxu0 %v1689
    %1845 = vmatpush.msra.mxu0 %v1687
    %1846 = vmatpush.msra.mxu0 %v1685
    %1847 = vmatpush.msra.mxu0 %v1683
    %1848 = vmatpush.msra.mxu0 %v1681
    %1849 = vmatpush.msra.mxu0 %v1679
    %1850 = vmatpush.msra.mxu0 %v1677
    %1851 = vmatpush.msra.mxu0 %v1675
    %1852 = vmatpush.msra.mxu0 %v1673
    %1853 = vmatpush.msra.mxu0 %v1671
    %1854 = vmatmul.f32.gmra.mxu0 %v1476
    %v1855 = vpop.f32.mrf.mxu0
    %v1856 = vadd.f32 %v1836, %v1855
    %1857 = vdwg.mxu0
    %1858 = vmatpush.msra.mxu0 %v1733
    %1859 = vmatpush.msra.mxu0 %v1731
    %1860 = vmatpush.msra.mxu0 %v1729
    %1861 = vmatpush.msra.mxu0 %v1727
    %1862 = vmatpush.msra.mxu0 %v1725
    %1863 = vmatpush.msra.mxu0 %v1723
    %1864 = vmatpush.msra.mxu0 %v1721
    %1865 = vmatpush.msra.mxu0 %v1719
    %1866 = vmatpush.msra.mxu0 %v1717
    %1867 = vmatpush.msra.mxu0 %v1715
    %1868 = vmatpush.msra.mxu0 %v1713
    %1869 = vmatpush.msra.mxu0 %v1711
    %1870 = vmatpush.msra.mxu0 %v1709
    %1871 = vmatpush.msra.mxu0 %v1707
    %1872 = vmatpush.msra.mxu0 %v1705
    %1873 = vmatpush.msra.mxu0 %v1703
    %1874 = vmatmul.f32.gmra.mxu0 %v1477
    %v1875 = vpop.f32.mrf.mxu0
    %v1876 = vadd.f32 %v1856, %v1875
    %1877 = vdwg.mxu0
    %1878 = vmatpush.msra.mxu0 %v1765
    %1879 = vmatpush.msra.mxu0 %v1763
    %1880 = vmatpush.msra.mxu0 %v1761
    %1881 = vmatpush.msra.mxu0 %v1759
    %1882 = vmatpush.msra.mxu0 %v1757
    %1883 = vmatpush.msra.mxu0 %v1755
    %1884 = vmatpush.msra.mxu0 %v1753
    %1885 = vmatpush.msra.mxu0 %v1751
    %1886 = vmatpush.msra.mxu0 %v1749
    %1887 = vmatpush.msra.mxu0 %v1747
    %1888 = vmatpush.msra.mxu0 %v1745
    %1889 = vmatpush.msra.mxu0 %v1743
    %1890 = vmatpush.msra.mxu0 %v1741
    %1891 = vmatpush.msra.mxu0 %v1739
    %1892 = vmatpush.msra.mxu0 %v1737
    %1893 = vmatpush.msra.mxu0 %v1735
    %1894 = vmatmul.f32.gmra.mxu0 %v1478
    %v1895 = vpop.f32.mrf.mxu0
    %v1896 = vadd.f32 %v1876, %v1895
    %1897 = vdwg.mxu0
    %1898 = vmatpush.msra.mxu0 %v1606
    %1899 = vmatpush.msra.mxu0 %v1604
    %1900 = vmatpush.msra.mxu0 %v1602
    %1901 = vmatpush.msra.mxu0 %v1600
    %1902 = vmatpush.msra.mxu0 %v1598
    %1903 = vmatpush.msra.mxu0 %v1596
    %1904 = vmatpush.msra.mxu0 %v1594
    %1905 = vmatpush.msra.mxu0 %v1592
    %1906 = vmatpush.msra.mxu0 %v1590
    %1907 = vmatpush.msra.mxu0 %v1588
    %1908 = vmatpush.msra.mxu0 %v1586
    %1909 = vmatpush.msra.mxu0 %v1584
    %1910 = vmatpush.msra.mxu0 %v1582
    %1911 = vmatpush.msra.mxu0 %v1580
    %1912 = vmatpush.msra.mxu0 %v1578
    %1913 = vmatpush.msra.mxu0 %v1576
    %1914 = vmatmul.f32.gmra.mxu0 %v1473
    %v1915 = vpop.f32.mrf.mxu0
    %v1916 = vadd.f32 %v1775, %v1915
    %1917 = vdwg.mxu0
    %1918 = vmatpush.msra.mxu0 %v1638
    %1919 = vmatpush.msra.mxu0 %v1636
    %1920 = vmatpush.msra.mxu0 %v1634
    %1921 = vmatpush.msra.mxu0 %v1632
    %1922 = vmatpush.msra.mxu0 %v1630
    %1923 = vmatpush.msra.mxu0 %v1628
    %1924 = vmatpush.msra.mxu0 %v1626
    %1925 = vmatpush.msra.mxu0 %v1624
    %1926 = vmatpush.msra.mxu0 %v1622
    %1927 = vmatpush.msra.mxu0 %v1620
    %1928 = vmatpush.msra.mxu0 %v1618
    %1929 = vmatpush.msra.mxu0 %v1616
    %1930 = vmatpush.msra.mxu0 %v1614
    %1931 = vmatpush.msra.mxu0 %v1612
    %1932 = vmatpush.msra.mxu0 %v1610
    %1933 = vmatpush.msra.mxu0 %v1608
    %1934 = vmatmul.f32.gmra.mxu0 %v1474
    %v1935 = vpop.f32.mrf.mxu0
    %v1936 = vadd.f32 %v1916, %v1935
    %1937 = vdwg.mxu0
    %1938 = vmatpush.msra.mxu0 %v1670
    %1939 = vmatpush.msra.mxu0 %v1668
    %1940 = vmatpush.msra.mxu0 %v1666
    %1941 = vmatpush.msra.mxu0 %v1664
    %1942 = vmatpush.msra.mxu0 %v1662
    %1943 = vmatpush.msra.mxu0 %v1660
    %1944 = vmatpush.msra.mxu0 %v1658
    %1945 = vmatpush.msra.mxu0 %v1656
    %1946 = vmatpush.msra.mxu0 %v1654
    %1947 = vmatpush.msra.mxu0 %v1652
    %1948 = vmatpush.msra.mxu0 %v1650
    %1949 = vmatpush.msra.mxu0 %v1648
    %1950 = vmatpush.msra.mxu0 %v1646
    %1951 = vmatpush.msra.mxu0 %v1644
    %1952 = vmatpush.msra.mxu0 %v1642
    %1953 = vmatpush.msra.mxu0 %v1640
    %1954 = vmatmul.f32.gmra.mxu0 %v1475
    %v1955 = vpop.f32.mrf.mxu0
    %v1956 = vadd.f32 %v1936, %v1955
    %1957 = vdwg.mxu0
    %1958 = vmatpush.msra.mxu0 %v1702
    %1959 = vmatpush.msra.mxu0 %v1700
    %1960 = vmatpush.msra.mxu0 %v1698
    %1961 = vmatpush.msra.mxu0 %v1696
    %1962 = vmatpush.msra.mxu0 %v1694
    %1963 = vmatpush.msra.mxu0 %v1692
    %1964 = vmatpush.msra.mxu0 %v1690
    %1965 = vmatpush.msra.mxu0 %v1688
    %1966 = vmatpush.msra.mxu0 %v1686
    %1967 = vmatpush.msra.mxu0 %v1684
    %1968 = vmatpush.msra.mxu0 %v1682
    %1969 = vmatpush.msra.mxu0 %v1680
    %1970 = vmatpush.msra.mxu0 %v1678
    %1971 = vmatpush.msra.mxu0 %v1676
    %1972 = vmatpush.msra.mxu0 %v1674
    %1973 = vmatpush.msra.mxu0 %v1672
    %1974 = vmatmul.f32.gmra.mxu0 %v1476
    %v1975 = vpop.f32.mrf.mxu0
    %v1976 = vadd.f32 %v1956, %v1975
    %1977 = vdwg.mxu0
    %1978 = vmatpush.msra.mxu0 %v1734
    %1979 = vmatpush.msra.mxu0 %v1732
    %1980 = vmatpush.msra.mxu0 %v1730
    %1981 = vmatpush.msra.mxu0 %v1728
    %1982 = vmatpush.msra.mxu0 %v1726
    %1983 = vmatpush.msra.mxu0 %v1724
    %1984 = vmatpush.msra.mxu0 %v1722
    %1985 = vmatpush.msra.mxu0 %v1720
    %1986 = vmatpush.msra.mxu0 %v1718
    %1987 = vmatpush.msra.mxu0 %v1716
    %1988 = vmatpush.msra.mxu0 %v1714
    %1989 = vmatpush.msra.mxu0 %v1712
    %1990 = vmatpush.msra.mxu0 %v1710
    %1991 = vmatpush.msra.mxu0 %v1708
    %1992 = vmatpush.msra.mxu0 %v1706
    %1993 = vmatpush.msra.mxu0 %v1704
    %1994 = vmatmul.f32.gmra.mxu0 %v1477
    %v1995 = vpop.f32.mrf.mxu0
    %v1996 = vadd.f32 %v1976, %v1995
    %1997 = vdwg.mxu0
    %1998 = vmatpush.msra.mxu0 %v1766
    %1999 = vmatpush.msra.mxu0 %v1764
    %2000 = vmatpush.msra.mxu0 %v1762
    %2001 = vmatpush.msra.mxu0 %v1760
    %2002 = vmatpush.msra.mxu0 %v1758
    %2003 = vmatpush.msra.mxu0 %v1756
    %2004 = vmatpush.msra.mxu0 %v1754
    %2005 = vmatpush.msra.mxu0 %v1752
    %2006 = vmatpush.msra.mxu0 %v1750
    %2007 = vmatpush.msra.mxu0 %v1748
    %2008 = vmatpush.msra.mxu0 %v1746
    %2009 = vmatpush.msra.mxu0 %v1744
    %2010 = vmatpush.msra.mxu0 %v1742
    %2011 = vmatpush.msra.mxu0 %v1740
    %2012 = vmatpush.msra.mxu0 %v1738
    %2013 = vmatpush.msra.mxu0 %v1736
    %2014 = vmatmul.f32.gmra.mxu0 %v1478
    %v2015 = vpop.f32.mrf.mxu0
    %v2016 = vadd.f32 %v1996, %v2015
    %2017 = vdwg.mxu0
    %vm2018 = vcmp.ge.f32.partialorder %v1896, 0.0
    %vm2019 = vcmp.ge.f32.partialorder %v2016, 0.0
    %v2020 = vmul.f32 %v1896, 1e-05
    %v2021 = vmul.f32 %v2016, 1e-05
    %v2022 = vsel %vm2018, %v1896, %v2020
    %v2023 = vsel %vm2019, %v2016, %v2021
    %v2024 = vld [vmem:[%s8] sm:$0xff]
    %v2025 = vld [vmem:[%s8 + $0x8] sm:$0xff]
    %v2026 = vld [vmem:[%s8 + $0x10] sm:$0xff]
    %v2027 = vld [vmem:[%s8 + $0x18] sm:$0xff]
    %v2028 = vld [vmem:[%s8 + $0x20] sm:$0xff]
    %v2029 = vld [vmem:[%s8 + $0x28] sm:$0xff]
    %v2030 = vld [vmem:[%s8 + $0x30] sm:$0xff]
    %v2031 = vld [vmem:[%s8 + $0x38] sm:$0xff]
    %v2032 = vld [vmem:[%s8 + $0x40] sm:$0xff]
    %v2033 = vld [vmem:[%s8 + $0x48] sm:$0xff]
    %v2034 = vld [vmem:[%s8 + $0x50] sm:$0xff]
    %v2035 = vld [vmem:[%s8 + $0x58] sm:$0xff]
    %v2036 = vld [vmem:[%s8 + $0x60] sm:$0xff]
    %v2037 = vld [vmem:[%s8 + $0x68] sm:$0xff]
    %v2038 = vld [vmem:[%s8 + $0x70] sm:$0xff]
    %v2039 = vld [vmem:[%s8 + $0x78] sm:$0xff]
    %v2040 = vld [vmem:[%s8 + $0x80] sm:$0xff]
    %v2041 = vld [vmem:[%s8 + $0x88] sm:$0xff]
    %v2042 = vld [vmem:[%s8 + $0x90] sm:$0xff]
    %v2043 = vld [vmem:[%s8 + $0x98] sm:$0xff]
    %v2044 = vld [vmem:[%s8 + $0xa0] sm:$0xff]
    %v2045 = vld [vmem:[%s8 + $0xa8] sm:$0xff]
    %v2046 = vld [vmem:[%s8 + $0xb0] sm:$0xff]
    %v2047 = vld [vmem:[%s8 + $0xb8] sm:$0xff]
    %v2048 = vld [vmem:[%s8 + $0xc0] sm:$0xff]
    %v2049 = vld [vmem:[%s8 + $0xc8] sm:$0xff]
    %v2050 = vld [vmem:[%s8 + $0xd0] sm:$0xff]
    %v2051 = vld [vmem:[%s8 + $0xd8] sm:$0xff]
    %v2052 = vld [vmem:[%s8 + $0xe0] sm:$0xff]
    %v2053 = vld [vmem:[%s8 + $0xe8] sm:$0xff]
    %v2054 = vld [vmem:[%s8 + $0xf0] sm:$0xff]
    %v2055 = vld [vmem:[%s8 + $0xf8] sm:$0xff]
    %v2056 = vld [vmem:[#allocation2] sm:$0x1]
    %v2058 = vperm.slane %v2056, 0
    %2060 = vmatpush.msra.mxu0 %v2039
    %2061 = vmatpush.msra.mxu0 %v2038
    %2062 = vmatpush.msra.mxu0 %v2037
    %2063 = vmatpush.msra.mxu0 %v2036
    %2064 = vmatpush.msra.mxu0 %v2035
    %2065 = vmatpush.msra.mxu0 %v2034
    %2066 = vmatpush.msra.mxu0 %v2033
    %2067 = vmatpush.msra.mxu0 %v2032
    %2068 = vmatpush.msra.mxu0 %v2031
    %2069 = vmatpush.msra.mxu0 %v2030
    %2070 = vmatpush.msra.mxu0 %v2029
    %2071 = vmatpush.msra.mxu0 %v2028
    %2072 = vmatpush.msra.mxu0 %v2027
    %2073 = vmatpush.msra.mxu0 %v2026
    %2074 = vmatpush.msra.mxu0 %v2025
    %2075 = vmatpush.msra.mxu0 %v2024
    %2076 = vmatmul.f32.gmra.mxu0 %v2022
    %v2077 = vpop.f32.mrf.mxu0
    %v2078 = vadd.f32 %v2058, %v2077
    %2079 = vdwg.mxu0
    %2080 = vmatpush.msra.mxu0 %v2055
    %2081 = vmatpush.msra.mxu0 %v2054
    %2082 = vmatpush.msra.mxu0 %v2053
    %2083 = vmatpush.msra.mxu0 %v2052
    %2084 = vmatpush.msra.mxu0 %v2051
    %2085 = vmatpush.msra.mxu0 %v2050
    %2086 = vmatpush.msra.mxu0 %v2049
    %2087 = vmatpush.msra.mxu0 %v2048
    %2088 = vmatpush.msra.mxu0 %v2047
    %2089 = vmatpush.msra.mxu0 %v2046
    %2090 = vmatpush.msra.mxu0 %v2045
    %2091 = vmatpush.msra.mxu0 %v2044
    %2092 = vmatpush.msra.mxu0 %v2043
    %2093 = vmatpush.msra.mxu0 %v2042
    %2094 = vmatpush.msra.mxu0 %v2041
    %2095 = vmatpush.msra.mxu0 %v2040
    %2096 = vmatmul.f32.gmra.mxu0 %v2023
    %v2097 = vpop.f32.mrf.mxu0
    %v2098 = vadd.f32 %v2078, %v2097
    %2099 = vdwg.mxu0
    %v2100 = vxor.u32 %v2098, 2147483648
    %v2101 = vmul.f32 %v2100, 1.442695
    %v2102 = vpow.pop %v2101
    %v2103 = vadd.f32 %v2102, 1.0
    %v2104 = vrcp.pop %v2103
    %v2105 = vmul.f32 %v2103, %v2104
    %v2106 = vsub.f32 1.0, %v2105
    %v2107 = vmul.f32 %v2104, %v2106
    %v2108 = vadd.f32 %v2104, %v2107
    %vm2109 = vweird.f32 %v2103
    %vm2110 = vweird.f32 %v2104
    %vm2111 = vmor %vm2109, %vm2110
    %v2112 = vsel %vm2111, %v2104, %v2108
    %v2113 = vand.u32 2147483647, %v2103
    %vm2114 = vcmp.eq.f32.partialorder %v2113, 8.507059e+37
    %v2115 = vand.u32 %v2103, 2147483648
    %v2116 = vor.u32 1.1754944e-38, %v2115
    %v2117 = vsel %vm2114, %v2116, %v2112
    %v2118 = vmul.f32 1.0, %v2117
    %v2120 = vrot.slane %v2118, 1
    %vm2122 = vcmask 0
    %2123 = vst.msk [vmem:[%s10] sm:$0x1] %vm2122, %v2118
    %2124 = vst.msk [vmem:[%s10 + $0x1] sm:$0x1] %vm2122, %v2120
    // Predicated region
    $region46: #{tpu_custom_call.1} parent=1 // pred_check
      _
    $region47: #{tpu_custom_call.1} parent=1 // pred_check_branch
      %2126 = sbr.rel (0) target = $region49
    $region48: #{tpu_custom_call.1} parent=1 // pred_region
      _
    $region49: #{tpu_custom_call.1} parent=1 // pred_fallthru
      _
    // Predicated region
    $region50: #{tpu_custom_call.1} parent=1 // pred_check
      _
    $region51: #{tpu_custom_call.1} parent=1 // pred_check_branch
      %2128 = sbr.rel (0) target = $region53
    $region52: #{tpu_custom_call.1} parent=1 // pred_region
      _
    $region53: #{tpu_custom_call.1} parent=1 // pred_fallthru
      _
    %2129 = vsyncpa [#allocation4], 1

</llo_original>
